<compile_context>
chip_gen: v7x
topology: tpu7x:2x2x1
jax: 0.10.0
libtpu: 0.0.40
codegen_flags: <defaults>
</compile_context>

<pallas_src>
import functools

import jax
import jax.numpy as jnp
import numpy as np
from jax.experimental import pallas as pl
from jax.experimental.pallas import tpu as pltpu


def _sigmoid(z):
    return 1.0 / (1.0 + jnp.exp(-z))


def _sum_all(v):
    # (R, C) -> (1, 1); two-stage reduce, kept 2-D for layout friendliness.
    return jnp.sum(jnp.sum(v, axis=1, keepdims=True), axis=0, keepdims=True)


def _attentive_lstm_kernel(B, T, NS, H,
                           x_ref,      # (T*N, D)  time-major input slab
                           wfT_ref,    # (D, H)    feature-transform W^T
                           bf_ref,     # (1, H)
                           wihT_ref,   # (H, 4H)   fused input->gates W^T  (i|f|g|o)
                           whhT_ref,   # (H, 4H)   fused hidden->gates W^T
                           bg_ref,     # (1, 4H)   b_ih + b_hh (pre-summed)
                           gamma_ref,  # (N, H)    context-norm scale (tiled over B)
                           beta_ref,   # (N, H)    context-norm shift (tiled over B)
                           o_ref):     # (N, H)
    N = B * NS
    f32 = jnp.float32

    # --- feature transform + input->gate projection: two fused whole-slab MXU matmuls ---
    feat = jnp.tanh(
        jnp.dot(x_ref[...], wfT_ref[...], preferred_element_type=f32) + bf_ref[...])
    gates_x = jnp.dot(feat, wihT_ref[...], preferred_element_type=f32) + bg_ref[...]

    whhT = whhT_ref[...]

    # --- LSTM recurrence: static unroll over T, only the recurrent matmul per step ---
    c = jnp.zeros((N, H), f32)
    h = jnp.zeros((N, H), f32)
    hs = []
    for t in range(T):
        g_all = gates_x[t * N:(t + 1) * N, :]          # (N, 4H), sublane-aligned slice
        if t > 0:                                      # h == 0 at t == 0
            g_all = g_all + jnp.dot(h, whhT, preferred_element_type=f32)
        i_g = _sigmoid(g_all[:, 0:H])
        f_g = _sigmoid(g_all[:, H:2 * H])
        g_g = jnp.tanh(g_all[:, 2 * H:3 * H])
        o_g = _sigmoid(g_all[:, 3 * H:4 * H])
        c = f_g * c + i_g * g_g
        h = o_g * jnp.tanh(c)
        hs.append(h)

    # --- attention: scores_t = <h_t, h_T>, softmax over t, context = sum_t alpha_t h_t ---
    h_last = hs[-1]
    scores = [jnp.sum(ht * h_last, axis=-1, keepdims=True) for ht in hs]   # (N, 1) each
    m = scores[0]
    for s in scores[1:]:
        m = jnp.maximum(m, s)
    ps = [jnp.exp(s - m) for s in scores]
    denom = ps[0]
    for p in ps[1:]:
        denom = denom + p
    inv = pl.reciprocal(denom)             # exact (approx would break the 1e-5 check)
    context = (ps[0] * inv) * hs[0]
    for t in range(1, T):
        context = context + (ps[t] * inv) * hs[t]                          # (N, H)

    # --- context normalization: per original batch element b = NS consecutive rows ---
    row = jax.lax.broadcasted_iota(jnp.int32, (N, 1), 0)
    cnt = float(NS * H)
    mean_rows = jnp.zeros((N, 1), f32)
    inv_rows = jnp.zeros((N, 1), f32)
    for b in range(B):                      # B is small & static
        mask = jnp.logical_and(row >= b * NS, row < (b + 1) * NS).astype(f32)  # (N, 1)
        mean_b = _sum_all(context * mask) / cnt                                 # (1, 1)
        var_b = _sum_all(((context - mean_b) ** 2) * mask) / (cnt - 1.0)        # unbiased
        inv_b = pl.reciprocal(jnp.sqrt(var_b) + 1e-9)
        mean_rows = mean_rows + mask * mean_b
        inv_rows = inv_rows + mask * inv_b

    normed = (context - mean_rows) * inv_rows
    o_ref[...] = (gamma_ref[...] * normed + beta_ref[...]).astype(o_ref.dtype)


def attentive_lstm_forward(x, params):
    """x: (B, T, NS, D) float32.  Returns (B, NS, H) == AttentiveLSTM.forward(x)."""
    wf, bf, wih, bih, whh, bhh, gamma, beta = params
    B, T, NS, D = x.shape
    H = wf.shape[0]
    N = B * NS

    # Plain-XLA glue outside the kernel.
    # (a) torch's raw-memory reshape to (B*NS, T, D) (reproduced exactly):
    x_rs = jnp.reshape(x, (N, T, D))
    # (b) time-major (T*N, D) slab so each LSTM step reads a contiguous,
    #     sublane-aligned block of N rows inside the kernel:
    x_slab = jnp.transpose(x_rs, (1, 0, 2)).reshape(T * N, D)

    wfT = wf.T                                  # (D, H)
    wihT = wih.T                                # (H, 4H): all 4 gates in one matmul
    whhT = whh.T                                # (H, 4H)
    bf2 = bf.reshape(1, H)
    bg2 = (bih + bhh).reshape(1, 4 * H)         # fused LSTM bias (added once in gates_x)
    gamma_rep = jnp.tile(gamma, (B, 1))         # (N, H): row n -> gamma[n % NS]
    beta_rep = jnp.tile(beta, (B, 1))

    kernel = functools.partial(_attentive_lstm_kernel, B, T, NS, H)
    vmem = lambda: pl.BlockSpec(memory_space=pltpu.MemorySpace.VMEM)

    # Gridless single invocation: all operands together are < 64 KiB, far below the
    # scoped-VMEM default on any TPU generation (incl. v7x's 64 MiB physical VMEM).
    # For production sizes (large H/T) this would switch to a grid + tiled BlockSpecs
    # with the gate matmuls K-tiled; unnecessary at these shapes.
    out = pl.pallas_call(
        kernel,
        out_shape=jax.ShapeDtypeStruct((N, H), jnp.float32),
        in_specs=[vmem() for _ in range(8)],
        out_specs=vmem(),
    )(x_slab, wfT, bf2, wihT, whhT, bg2, gamma_rep, beta_rep)

    return out.reshape(B, NS, H)


def reference_forward(x, params):
    """Pure-JAX replica of the PyTorch AttentiveLSTM forward (for verification)."""
    wf, bf, wih, bih, whh, bhh, gamma, beta = params
    B, T, NS, D = x.shape
    H = wf.shape[0]
    N = B * NS

    xr = x.reshape(N, T, D)
    feat = jnp.tanh(xr @ wf.T + bf)                      # (N, T, H)

    h = jnp.zeros((N, H), jnp.float32)
    c = jnp.zeros((N, H), jnp.float32)
    hs = []
    for t in range(T):
        gates = feat[:, t, :] @ wih.T + bih + h @ whh.T + bhh
        i = _sigmoid(gates[:, 0:H])
        f = _sigmoid(gates[:, H:2 * H])
        g = jnp.tanh(gates[:, 2 * H:3 * H])
        o = _sigmoid(gates[:, 3 * H:4 * H])
        c = f * c + i * g
        h = o * jnp.tanh(c)
        hs.append(h)
    lstm_out = jnp.stack(hs, axis=1)                     # (N, T, H)

    h_T = lstm_out[:, -1, :]
    scores = jnp.sum(lstm_out * h_T[:, None, :], axis=-1)            # (N, T)
    scores = scores - jnp.max(scores, axis=1, keepdims=True)
    p = jnp.exp(scores)
    alpha = p / jnp.sum(p, axis=1, keepdims=True)
    ctx = jnp.sum(alpha[:, :, None] * lstm_out, axis=1)              # (N, H)

    ctx3 = ctx.reshape(B, NS, H)
    mean = jnp.mean(ctx3, axis=(1, 2), keepdims=True)
    std = jnp.std(ctx3, axis=(1, 2), keepdims=True, ddof=1)          # torch.std: unbiased
    normed = (ctx3 - mean) / (std + 1e-9)
    return gamma * normed + beta


if __name__ == "__main__":
    # batch=2, seq_len=8, num_stocks=4, input_dim=16, hidden_dim=32
    B, T, NS, D, H = 2, 8, 4, 16, 32

    key = jax.random.PRNGKey(0)
    ks = jax.random.split(key, 10)
    x = jax.random.normal(ks[0], (B, T, NS, D), dtype=jnp.float32)

    def uniform(k, shape, fan_in):
        s = 1.0 / float(np.sqrt(fan_in))
        return jax.random.uniform(k, shape, jnp.float32, -s, s)

    wf = uniform(ks[1], (H, D), D)          # feature_transform.weight
    bf = uniform(ks[2], (H,), D)            # feature_transform.bias
    wih = uniform(ks[3], (4 * H, H), H)     # lstm.weight_ih_l0 (i|f|g|o)
    bih = uniform(ks[4], (4 * H,), H)       # lstm.bias_ih_l0
    whh = uniform(ks[5], (4 * H, H), H)     # lstm.weight_hh_l0
    bhh = uniform(ks[6], (4 * H,), H)       # lstm.bias_hh_l0
    gamma = 1.0 + 0.1 * jax.random.normal(ks[7], (NS, H), jnp.float32)
    beta = 0.1 * jax.random.normal(ks[8], (NS, H), jnp.float32)
    params = (wf, bf, wih, bih, whh, bhh, gamma, beta)

    out = jax.block_until_ready(attentive_lstm_forward(x, params))
    ref = jax.block_until_ready(reference_forward(x, params))

    assert out.shape == (B, NS, H)
    np.testing.assert_allclose(np.asarray(out), np.asarray(ref), rtol=1e-5, atol=1e-5)
    print("KERNEL_OK")
</pallas_src>

<mosaic_0001>
module attributes {stable_mosaic.version = 11 : i64} {
  func.func @_attentive_lstm_kernel(%arg0: memref<64x16xf32, #tpu.memory_space<vmem>>, %arg1: memref<16x32xf32, #tpu.memory_space<vmem>>, %arg2: memref<1x32xf32, #tpu.memory_space<vmem>>, %arg3: memref<32x128xf32, #tpu.memory_space<vmem>>, %arg4: memref<32x128xf32, #tpu.memory_space<vmem>>, %arg5: memref<1x128xf32, #tpu.memory_space<vmem>>, %arg6: memref<8x32xf32, #tpu.memory_space<vmem>>, %arg7: memref<8x32xf32, #tpu.memory_space<vmem>>, %arg8: memref<8x32xf32, #tpu.memory_space<vmem>>) attributes {dimension_semantics = [], scalar_prefetch = 0 : i64, scratch_operands = 0 : i64, tpu.core_type = #tpu.core_type<tc>} {
    %c0 = arith.constant 0 : index
    %c0_0 = arith.constant 0 : index
    %0 = vector.load %arg0[%c0, %c0_0] : memref<64x16xf32, #tpu.memory_space<vmem>>, vector<64x16xf32>
    %c0_1 = arith.constant 0 : index
    %c0_2 = arith.constant 0 : index
    %1 = vector.load %arg1[%c0_1, %c0_2] : memref<16x32xf32, #tpu.memory_space<vmem>>, vector<16x32xf32>
    %cst = arith.constant dense<0.000000e+00> : vector<64x32xf32>
    %2 = tpu.matmul %0, %1, %cst {dimension_numbers = #tpu.dot_dimension_numbers<[1], [0], [0], [1], [0, 0, 1, 1], [], []>} : vector<64x16xf32>, vector<16x32xf32>, vector<64x32xf32> -> vector<64x32xf32>
    %c0_3 = arith.constant 0 : index
    %c0_4 = arith.constant 0 : index
    %3 = vector.load %arg2[%c0_3, %c0_4] : memref<1x32xf32, #tpu.memory_space<vmem>>, vector<1x32xf32>
    %4 = vector.broadcast %3 : vector<1x32xf32> to vector<64x32xf32>
    %5 = arith.addf %2, %4 : vector<64x32xf32>
    %6 = math.tanh %5 : vector<64x32xf32>
    %c0_5 = arith.constant 0 : index
    %c0_6 = arith.constant 0 : index
    %7 = vector.load %arg3[%c0_5, %c0_6] : memref<32x128xf32, #tpu.memory_space<vmem>>, vector<32x128xf32>
    %cst_7 = arith.constant dense<0.000000e+00> : vector<64x128xf32>
    %8 = tpu.matmul %6, %7, %cst_7 {dimension_numbers = #tpu.dot_dimension_numbers<[1], [0], [0], [1], [0, 0, 1, 1], [], []>} : vector<64x32xf32>, vector<32x128xf32>, vector<64x128xf32> -> vector<64x128xf32>
    %c0_8 = arith.constant 0 : index
    %c0_9 = arith.constant 0 : index
    %9 = vector.load %arg5[%c0_8, %c0_9] : memref<1x128xf32, #tpu.memory_space<vmem>>, vector<1x128xf32>
    %10 = vector.broadcast %9 : vector<1x128xf32> to vector<64x128xf32>
    %11 = arith.addf %8, %10 : vector<64x128xf32>
    %c0_10 = arith.constant 0 : index
    %c0_11 = arith.constant 0 : index
    %12 = vector.load %arg4[%c0_10, %c0_11] : memref<32x128xf32, #tpu.memory_space<vmem>>, vector<32x128xf32>
    %cst_12 = arith.constant 0.000000e+00 : f32
    %13 = vector.broadcast %cst_12 : f32 to vector<8x32xf32>
    %14 = vector.extract_strided_slice %11 {offsets = [0, 0], sizes = [8, 128], strides = [1, 1]} : vector<64x128xf32> to vector<8x128xf32>
    %15 = vector.extract_strided_slice %14 {offsets = [0, 0], sizes = [8, 32], strides = [1, 1]} : vector<8x128xf32> to vector<8x32xf32>
    %cst_13 = arith.constant 0.000000e+00 : f32
    %16 = vector.broadcast %cst_13 : f32 to vector<8x32xf32>
    %17 = arith.subf %16, %15 : vector<8x32xf32>
    %18 = math.exp %17 : vector<8x32xf32>
    %cst_14 = arith.constant 1.000000e+00 : f32
    %19 = vector.broadcast %cst_14 : f32 to vector<8x32xf32>
    %20 = arith.addf %19, %18 : vector<8x32xf32>
    %cst_15 = arith.constant 1.000000e+00 : f32
    %21 = vector.broadcast %cst_15 : f32 to vector<8x32xf32>
    %22 = arith.divf %21, %20 : vector<8x32xf32>
    %23 = vector.extract_strided_slice %14 {offsets = [0, 32], sizes = [8, 32], strides = [1, 1]} : vector<8x128xf32> to vector<8x32xf32>
    %cst_16 = arith.constant 0.000000e+00 : f32
    %24 = vector.broadcast %cst_16 : f32 to vector<8x32xf32>
    %25 = arith.subf %24, %23 : vector<8x32xf32>
    %26 = math.exp %25 : vector<8x32xf32>
    %cst_17 = arith.constant 1.000000e+00 : f32
    %27 = vector.broadcast %cst_17 : f32 to vector<8x32xf32>
    %28 = arith.addf %27, %26 : vector<8x32xf32>
    %cst_18 = arith.constant 1.000000e+00 : f32
    %29 = vector.broadcast %cst_18 : f32 to vector<8x32xf32>
    %30 = arith.divf %29, %28 : vector<8x32xf32>
    %31 = vector.extract_strided_slice %14 {offsets = [0, 64], sizes = [8, 32], strides = [1, 1]} : vector<8x128xf32> to vector<8x32xf32>
    %32 = math.tanh %31 : vector<8x32xf32>
    %33 = vector.extract_strided_slice %14 {offsets = [0, 96], sizes = [8, 32], strides = [1, 1]} : vector<8x128xf32> to vector<8x32xf32>
    %cst_19 = arith.constant 0.000000e+00 : f32
    %34 = vector.broadcast %cst_19 : f32 to vector<8x32xf32>
    %35 = arith.subf %34, %33 : vector<8x32xf32>
    %36 = math.exp %35 : vector<8x32xf32>
    %cst_20 = arith.constant 1.000000e+00 : f32
    %37 = vector.broadcast %cst_20 : f32 to vector<8x32xf32>
    %38 = arith.addf %37, %36 : vector<8x32xf32>
    %cst_21 = arith.constant 1.000000e+00 : f32
    %39 = vector.broadcast %cst_21 : f32 to vector<8x32xf32>
    %40 = arith.divf %39, %38 : vector<8x32xf32>
    %41 = arith.mulf %30, %13 : vector<8x32xf32>
    %42 = arith.mulf %22, %32 : vector<8x32xf32>
    %43 = arith.addf %41, %42 : vector<8x32xf32>
    %44 = math.tanh %43 : vector<8x32xf32>
    %45 = arith.mulf %40, %44 : vector<8x32xf32>
    %46 = vector.extract_strided_slice %11 {offsets = [8, 0], sizes = [8, 128], strides = [1, 1]} : vector<64x128xf32> to vector<8x128xf32>
    %cst_22 = arith.constant dense<0.000000e+00> : vector<8x128xf32>
    %47 = tpu.matmul %45, %12, %cst_22 {dimension_numbers = #tpu.dot_dimension_numbers<[1], [0], [0], [1], [0, 0, 1, 1], [], []>} : vector<8x32xf32>, vector<32x128xf32>, vector<8x128xf32> -> vector<8x128xf32>
    %48 = arith.addf %46, %47 : vector<8x128xf32>
    %49 = vector.extract_strided_slice %48 {offsets = [0, 0], sizes = [8, 32], strides = [1, 1]} : vector<8x128xf32> to vector<8x32xf32>
    %cst_23 = arith.constant 0.000000e+00 : f32
    %50 = vector.broadcast %cst_23 : f32 to vector<8x32xf32>
    %51 = arith.subf %50, %49 : vector<8x32xf32>
    %52 = math.exp %51 : vector<8x32xf32>
    %cst_24 = arith.constant 1.000000e+00 : f32
    %53 = vector.broadcast %cst_24 : f32 to vector<8x32xf32>
    %54 = arith.addf %53, %52 : vector<8x32xf32>
    %cst_25 = arith.constant 1.000000e+00 : f32
    %55 = vector.broadcast %cst_25 : f32 to vector<8x32xf32>
    %56 = arith.divf %55, %54 : vector<8x32xf32>
    %57 = vector.extract_strided_slice %48 {offsets = [0, 32], sizes = [8, 32], strides = [1, 1]} : vector<8x128xf32> to vector<8x32xf32>
    %cst_26 = arith.constant 0.000000e+00 : f32
    %58 = vector.broadcast %cst_26 : f32 to vector<8x32xf32>
    %59 = arith.subf %58, %57 : vector<8x32xf32>
    %60 = math.exp %59 : vector<8x32xf32>
    %cst_27 = arith.constant 1.000000e+00 : f32
    %61 = vector.broadcast %cst_27 : f32 to vector<8x32xf32>
    %62 = arith.addf %61, %60 : vector<8x32xf32>
    %cst_28 = arith.constant 1.000000e+00 : f32
    %63 = vector.broadcast %cst_28 : f32 to vector<8x32xf32>
    %64 = arith.divf %63, %62 : vector<8x32xf32>
    %65 = vector.extract_strided_slice %48 {offsets = [0, 64], sizes = [8, 32], strides = [1, 1]} : vector<8x128xf32> to vector<8x32xf32>
    %66 = math.tanh %65 : vector<8x32xf32>
    %67 = vector.extract_strided_slice %48 {offsets = [0, 96], sizes = [8, 32], strides = [1, 1]} : vector<8x128xf32> to vector<8x32xf32>
    %cst_29 = arith.constant 0.000000e+00 : f32
    %68 = vector.broadcast %cst_29 : f32 to vector<8x32xf32>
    %69 = arith.subf %68, %67 : vector<8x32xf32>
    %70 = math.exp %69 : vector<8x32xf32>
    %cst_30 = arith.constant 1.000000e+00 : f32
    %71 = vector.broadcast %cst_30 : f32 to vector<8x32xf32>
    %72 = arith.addf %71, %70 : vector<8x32xf32>
    %cst_31 = arith.constant 1.000000e+00 : f32
    %73 = vector.broadcast %cst_31 : f32 to vector<8x32xf32>
    %74 = arith.divf %73, %72 : vector<8x32xf32>
    %75 = arith.mulf %64, %43 : vector<8x32xf32>
    %76 = arith.mulf %56, %66 : vector<8x32xf32>
    %77 = arith.addf %75, %76 : vector<8x32xf32>
    %78 = math.tanh %77 : vector<8x32xf32>
    %79 = arith.mulf %74, %78 : vector<8x32xf32>
    %80 = vector.extract_strided_slice %11 {offsets = [16, 0], sizes = [8, 128], strides = [1, 1]} : vector<64x128xf32> to vector<8x128xf32>
    %cst_32 = arith.constant dense<0.000000e+00> : vector<8x128xf32>
    %81 = tpu.matmul %79, %12, %cst_32 {dimension_numbers = #tpu.dot_dimension_numbers<[1], [0], [0], [1], [0, 0, 1, 1], [], []>} : vector<8x32xf32>, vector<32x128xf32>, vector<8x128xf32> -> vector<8x128xf32>
    %82 = arith.addf %80, %81 : vector<8x128xf32>
    %83 = vector.extract_strided_slice %82 {offsets = [0, 0], sizes = [8, 32], strides = [1, 1]} : vector<8x128xf32> to vector<8x32xf32>
    %cst_33 = arith.constant 0.000000e+00 : f32
    %84 = vector.broadcast %cst_33 : f32 to vector<8x32xf32>
    %85 = arith.subf %84, %83 : vector<8x32xf32>
    %86 = math.exp %85 : vector<8x32xf32>
    %cst_34 = arith.constant 1.000000e+00 : f32
    %87 = vector.broadcast %cst_34 : f32 to vector<8x32xf32>
    %88 = arith.addf %87, %86 : vector<8x32xf32>
    %cst_35 = arith.constant 1.000000e+00 : f32
    %89 = vector.broadcast %cst_35 : f32 to vector<8x32xf32>
    %90 = arith.divf %89, %88 : vector<8x32xf32>
    %91 = vector.extract_strided_slice %82 {offsets = [0, 32], sizes = [8, 32], strides = [1, 1]} : vector<8x128xf32> to vector<8x32xf32>
    %cst_36 = arith.constant 0.000000e+00 : f32
    %92 = vector.broadcast %cst_36 : f32 to vector<8x32xf32>
    %93 = arith.subf %92, %91 : vector<8x32xf32>
    %94 = math.exp %93 : vector<8x32xf32>
    %cst_37 = arith.constant 1.000000e+00 : f32
    %95 = vector.broadcast %cst_37 : f32 to vector<8x32xf32>
    %96 = arith.addf %95, %94 : vector<8x32xf32>
    %cst_38 = arith.constant 1.000000e+00 : f32
    %97 = vector.broadcast %cst_38 : f32 to vector<8x32xf32>
    %98 = arith.divf %97, %96 : vector<8x32xf32>
    %99 = vector.extract_strided_slice %82 {offsets = [0, 64], sizes = [8, 32], strides = [1, 1]} : vector<8x128xf32> to vector<8x32xf32>
    %100 = math.tanh %99 : vector<8x32xf32>
    %101 = vector.extract_strided_slice %82 {offsets = [0, 96], sizes = [8, 32], strides = [1, 1]} : vector<8x128xf32> to vector<8x32xf32>
    %cst_39 = arith.constant 0.000000e+00 : f32
    %102 = vector.broadcast %cst_39 : f32 to vector<8x32xf32>
    %103 = arith.subf %102, %101 : vector<8x32xf32>
    %104 = math.exp %103 : vector<8x32xf32>
    %cst_40 = arith.constant 1.000000e+00 : f32
    %105 = vector.broadcast %cst_40 : f32 to vector<8x32xf32>
    %106 = arith.addf %105, %104 : vector<8x32xf32>
    %cst_41 = arith.constant 1.000000e+00 : f32
    %107 = vector.broadcast %cst_41 : f32 to vector<8x32xf32>
    %108 = arith.divf %107, %106 : vector<8x32xf32>
    %109 = arith.mulf %98, %77 : vector<8x32xf32>
    %110 = arith.mulf %90, %100 : vector<8x32xf32>
    %111 = arith.addf %109, %110 : vector<8x32xf32>
    %112 = math.tanh %111 : vector<8x32xf32>
    %113 = arith.mulf %108, %112 : vector<8x32xf32>
    %114 = vector.extract_strided_slice %11 {offsets = [24, 0], sizes = [8, 128], strides = [1, 1]} : vector<64x128xf32> to vector<8x128xf32>
    %cst_42 = arith.constant dense<0.000000e+00> : vector<8x128xf32>
    %115 = tpu.matmul %113, %12, %cst_42 {dimension_numbers = #tpu.dot_dimension_numbers<[1], [0], [0], [1], [0, 0, 1, 1], [], []>} : vector<8x32xf32>, vector<32x128xf32>, vector<8x128xf32> -> vector<8x128xf32>
    %116 = arith.addf %114, %115 : vector<8x128xf32>
    %117 = vector.extract_strided_slice %116 {offsets = [0, 0], sizes = [8, 32], strides = [1, 1]} : vector<8x128xf32> to vector<8x32xf32>
    %cst_43 = arith.constant 0.000000e+00 : f32
    %118 = vector.broadcast %cst_43 : f32 to vector<8x32xf32>
    %119 = arith.subf %118, %117 : vector<8x32xf32>
    %120 = math.exp %119 : vector<8x32xf32>
    %cst_44 = arith.constant 1.000000e+00 : f32
    %121 = vector.broadcast %cst_44 : f32 to vector<8x32xf32>
    %122 = arith.addf %121, %120 : vector<8x32xf32>
    %cst_45 = arith.constant 1.000000e+00 : f32
    %123 = vector.broadcast %cst_45 : f32 to vector<8x32xf32>
    %124 = arith.divf %123, %122 : vector<8x32xf32>
    %125 = vector.extract_strided_slice %116 {offsets = [0, 32], sizes = [8, 32], strides = [1, 1]} : vector<8x128xf32> to vector<8x32xf32>
    %cst_46 = arith.constant 0.000000e+00 : f32
    %126 = vector.broadcast %cst_46 : f32 to vector<8x32xf32>
    %127 = arith.subf %126, %125 : vector<8x32xf32>
    %128 = math.exp %127 : vector<8x32xf32>
    %cst_47 = arith.constant 1.000000e+00 : f32
    %129 = vector.broadcast %cst_47 : f32 to vector<8x32xf32>
    %130 = arith.addf %129, %128 : vector<8x32xf32>
    %cst_48 = arith.constant 1.000000e+00 : f32
    %131 = vector.broadcast %cst_48 : f32 to vector<8x32xf32>
    %132 = arith.divf %131, %130 : vector<8x32xf32>
    %133 = vector.extract_strided_slice %116 {offsets = [0, 64], sizes = [8, 32], strides = [1, 1]} : vector<8x128xf32> to vector<8x32xf32>
    %134 = math.tanh %133 : vector<8x32xf32>
    %135 = vector.extract_strided_slice %116 {offsets = [0, 96], sizes = [8, 32], strides = [1, 1]} : vector<8x128xf32> to vector<8x32xf32>
    %cst_49 = arith.constant 0.000000e+00 : f32
    %136 = vector.broadcast %cst_49 : f32 to vector<8x32xf32>
    %137 = arith.subf %136, %135 : vector<8x32xf32>
    %138 = math.exp %137 : vector<8x32xf32>
    %cst_50 = arith.constant 1.000000e+00 : f32
    %139 = vector.broadcast %cst_50 : f32 to vector<8x32xf32>
    %140 = arith.addf %139, %138 : vector<8x32xf32>
    %cst_51 = arith.constant 1.000000e+00 : f32
    %141 = vector.broadcast %cst_51 : f32 to vector<8x32xf32>
    %142 = arith.divf %141, %140 : vector<8x32xf32>
    %143 = arith.mulf %132, %111 : vector<8x32xf32>
    %144 = arith.mulf %124, %134 : vector<8x32xf32>
    %145 = arith.addf %143, %144 : vector<8x32xf32>
    %146 = math.tanh %145 : vector<8x32xf32>
    %147 = arith.mulf %142, %146 : vector<8x32xf32>
    %148 = vector.extract_strided_slice %11 {offsets = [32, 0], sizes = [8, 128], strides = [1, 1]} : vector<64x128xf32> to vector<8x128xf32>
    %cst_52 = arith.constant dense<0.000000e+00> : vector<8x128xf32>
    %149 = tpu.matmul %147, %12, %cst_52 {dimension_numbers = #tpu.dot_dimension_numbers<[1], [0], [0], [1], [0, 0, 1, 1], [], []>} : vector<8x32xf32>, vector<32x128xf32>, vector<8x128xf32> -> vector<8x128xf32>
    %150 = arith.addf %148, %149 : vector<8x128xf32>
    %151 = vector.extract_strided_slice %150 {offsets = [0, 0], sizes = [8, 32], strides = [1, 1]} : vector<8x128xf32> to vector<8x32xf32>
    %cst_53 = arith.constant 0.000000e+00 : f32
    %152 = vector.broadcast %cst_53 : f32 to vector<8x32xf32>
    %153 = arith.subf %152, %151 : vector<8x32xf32>
    %154 = math.exp %153 : vector<8x32xf32>
    %cst_54 = arith.constant 1.000000e+00 : f32
    %155 = vector.broadcast %cst_54 : f32 to vector<8x32xf32>
    %156 = arith.addf %155, %154 : vector<8x32xf32>
    %cst_55 = arith.constant 1.000000e+00 : f32
    %157 = vector.broadcast %cst_55 : f32 to vector<8x32xf32>
    %158 = arith.divf %157, %156 : vector<8x32xf32>
    %159 = vector.extract_strided_slice %150 {offsets = [0, 32], sizes = [8, 32], strides = [1, 1]} : vector<8x128xf32> to vector<8x32xf32>
    %cst_56 = arith.constant 0.000000e+00 : f32
    %160 = vector.broadcast %cst_56 : f32 to vector<8x32xf32>
    %161 = arith.subf %160, %159 : vector<8x32xf32>
    %162 = math.exp %161 : vector<8x32xf32>
    %cst_57 = arith.constant 1.000000e+00 : f32
    %163 = vector.broadcast %cst_57 : f32 to vector<8x32xf32>
    %164 = arith.addf %163, %162 : vector<8x32xf32>
    %cst_58 = arith.constant 1.000000e+00 : f32
    %165 = vector.broadcast %cst_58 : f32 to vector<8x32xf32>
    %166 = arith.divf %165, %164 : vector<8x32xf32>
    %167 = vector.extract_strided_slice %150 {offsets = [0, 64], sizes = [8, 32], strides = [1, 1]} : vector<8x128xf32> to vector<8x32xf32>
    %168 = math.tanh %167 : vector<8x32xf32>
    %169 = vector.extract_strided_slice %150 {offsets = [0, 96], sizes = [8, 32], strides = [1, 1]} : vector<8x128xf32> to vector<8x32xf32>
    %cst_59 = arith.constant 0.000000e+00 : f32
    %170 = vector.broadcast %cst_59 : f32 to vector<8x32xf32>
    %171 = arith.subf %170, %169 : vector<8x32xf32>
    %172 = math.exp %171 : vector<8x32xf32>
    %cst_60 = arith.constant 1.000000e+00 : f32
    %173 = vector.broadcast %cst_60 : f32 to vector<8x32xf32>
    %174 = arith.addf %173, %172 : vector<8x32xf32>
    %cst_61 = arith.constant 1.000000e+00 : f32
    %175 = vector.broadcast %cst_61 : f32 to vector<8x32xf32>
    %176 = arith.divf %175, %174 : vector<8x32xf32>
    %177 = arith.mulf %166, %145 : vector<8x32xf32>
    %178 = arith.mulf %158, %168 : vector<8x32xf32>
    %179 = arith.addf %177, %178 : vector<8x32xf32>
    %180 = math.tanh %179 : vector<8x32xf32>
    %181 = arith.mulf %176, %180 : vector<8x32xf32>
    %182 = vector.extract_strided_slice %11 {offsets = [40, 0], sizes = [8, 128], strides = [1, 1]} : vector<64x128xf32> to vector<8x128xf32>
    %cst_62 = arith.constant dense<0.000000e+00> : vector<8x128xf32>
    %183 = tpu.matmul %181, %12, %cst_62 {dimension_numbers = #tpu.dot_dimension_numbers<[1], [0], [0], [1], [0, 0, 1, 1], [], []>} : vector<8x32xf32>, vector<32x128xf32>, vector<8x128xf32> -> vector<8x128xf32>
    %184 = arith.addf %182, %183 : vector<8x128xf32>
    %185 = vector.extract_strided_slice %184 {offsets = [0, 0], sizes = [8, 32], strides = [1, 1]} : vector<8x128xf32> to vector<8x32xf32>
    %cst_63 = arith.constant 0.000000e+00 : f32
    %186 = vector.broadcast %cst_63 : f32 to vector<8x32xf32>
    %187 = arith.subf %186, %185 : vector<8x32xf32>
    %188 = math.exp %187 : vector<8x32xf32>
    %cst_64 = arith.constant 1.000000e+00 : f32
    %189 = vector.broadcast %cst_64 : f32 to vector<8x32xf32>
    %190 = arith.addf %189, %188 : vector<8x32xf32>
    %cst_65 = arith.constant 1.000000e+00 : f32
    %191 = vector.broadcast %cst_65 : f32 to vector<8x32xf32>
    %192 = arith.divf %191, %190 : vector<8x32xf32>
    %193 = vector.extract_strided_slice %184 {offsets = [0, 32], sizes = [8, 32], strides = [1, 1]} : vector<8x128xf32> to vector<8x32xf32>
    %cst_66 = arith.constant 0.000000e+00 : f32
    %194 = vector.broadcast %cst_66 : f32 to vector<8x32xf32>
    %195 = arith.subf %194, %193 : vector<8x32xf32>
    %196 = math.exp %195 : vector<8x32xf32>
    %cst_67 = arith.constant 1.000000e+00 : f32
    %197 = vector.broadcast %cst_67 : f32 to vector<8x32xf32>
    %198 = arith.addf %197, %196 : vector<8x32xf32>
    %cst_68 = arith.constant 1.000000e+00 : f32
    %199 = vector.broadcast %cst_68 : f32 to vector<8x32xf32>
    %200 = arith.divf %199, %198 : vector<8x32xf32>
    %201 = vector.extract_strided_slice %184 {offsets = [0, 64], sizes = [8, 32], strides = [1, 1]} : vector<8x128xf32> to vector<8x32xf32>
    %202 = math.tanh %201 : vector<8x32xf32>
    %203 = vector.extract_strided_slice %184 {offsets = [0, 96], sizes = [8, 32], strides = [1, 1]} : vector<8x128xf32> to vector<8x32xf32>
    %cst_69 = arith.constant 0.000000e+00 : f32
    %204 = vector.broadcast %cst_69 : f32 to vector<8x32xf32>
    %205 = arith.subf %204, %203 : vector<8x32xf32>
    %206 = math.exp %205 : vector<8x32xf32>
    %cst_70 = arith.constant 1.000000e+00 : f32
    %207 = vector.broadcast %cst_70 : f32 to vector<8x32xf32>
    %208 = arith.addf %207, %206 : vector<8x32xf32>
    %cst_71 = arith.constant 1.000000e+00 : f32
    %209 = vector.broadcast %cst_71 : f32 to vector<8x32xf32>
    %210 = arith.divf %209, %208 : vector<8x32xf32>
    %211 = arith.mulf %200, %179 : vector<8x32xf32>
    %212 = arith.mulf %192, %202 : vector<8x32xf32>
    %213 = arith.addf %211, %212 : vector<8x32xf32>
    %214 = math.tanh %213 : vector<8x32xf32>
    %215 = arith.mulf %210, %214 : vector<8x32xf32>
    %216 = vector.extract_strided_slice %11 {offsets = [48, 0], sizes = [8, 128], strides = [1, 1]} : vector<64x128xf32> to vector<8x128xf32>
    %cst_72 = arith.constant dense<0.000000e+00> : vector<8x128xf32>
    %217 = tpu.matmul %215, %12, %cst_72 {dimension_numbers = #tpu.dot_dimension_numbers<[1], [0], [0], [1], [0, 0, 1, 1], [], []>} : vector<8x32xf32>, vector<32x128xf32>, vector<8x128xf32> -> vector<8x128xf32>
    %218 = arith.addf %216, %217 : vector<8x128xf32>
    %219 = vector.extract_strided_slice %218 {offsets = [0, 0], sizes = [8, 32], strides = [1, 1]} : vector<8x128xf32> to vector<8x32xf32>
    %cst_73 = arith.constant 0.000000e+00 : f32
    %220 = vector.broadcast %cst_73 : f32 to vector<8x32xf32>
    %221 = arith.subf %220, %219 : vector<8x32xf32>
    %222 = math.exp %221 : vector<8x32xf32>
    %cst_74 = arith.constant 1.000000e+00 : f32
    %223 = vector.broadcast %cst_74 : f32 to vector<8x32xf32>
    %224 = arith.addf %223, %222 : vector<8x32xf32>
    %cst_75 = arith.constant 1.000000e+00 : f32
    %225 = vector.broadcast %cst_75 : f32 to vector<8x32xf32>
    %226 = arith.divf %225, %224 : vector<8x32xf32>
    %227 = vector.extract_strided_slice %218 {offsets = [0, 32], sizes = [8, 32], strides = [1, 1]} : vector<8x128xf32> to vector<8x32xf32>
    %cst_76 = arith.constant 0.000000e+00 : f32
    %228 = vector.broadcast %cst_76 : f32 to vector<8x32xf32>
    %229 = arith.subf %228, %227 : vector<8x32xf32>
    %230 = math.exp %229 : vector<8x32xf32>
    %cst_77 = arith.constant 1.000000e+00 : f32
    %231 = vector.broadcast %cst_77 : f32 to vector<8x32xf32>
    %232 = arith.addf %231, %230 : vector<8x32xf32>
    %cst_78 = arith.constant 1.000000e+00 : f32
    %233 = vector.broadcast %cst_78 : f32 to vector<8x32xf32>
    %234 = arith.divf %233, %232 : vector<8x32xf32>
    %235 = vector.extract_strided_slice %218 {offsets = [0, 64], sizes = [8, 32], strides = [1, 1]} : vector<8x128xf32> to vector<8x32xf32>
    %236 = math.tanh %235 : vector<8x32xf32>
    %237 = vector.extract_strided_slice %218 {offsets = [0, 96], sizes = [8, 32], strides = [1, 1]} : vector<8x128xf32> to vector<8x32xf32>
    %cst_79 = arith.constant 0.000000e+00 : f32
    %238 = vector.broadcast %cst_79 : f32 to vector<8x32xf32>
    %239 = arith.subf %238, %237 : vector<8x32xf32>
    %240 = math.exp %239 : vector<8x32xf32>
    %cst_80 = arith.constant 1.000000e+00 : f32
    %241 = vector.broadcast %cst_80 : f32 to vector<8x32xf32>
    %242 = arith.addf %241, %240 : vector<8x32xf32>
    %cst_81 = arith.constant 1.000000e+00 : f32
    %243 = vector.broadcast %cst_81 : f32 to vector<8x32xf32>
    %244 = arith.divf %243, %242 : vector<8x32xf32>
    %245 = arith.mulf %234, %213 : vector<8x32xf32>
    %246 = arith.mulf %226, %236 : vector<8x32xf32>
    %247 = arith.addf %245, %246 : vector<8x32xf32>
    %248 = math.tanh %247 : vector<8x32xf32>
    %249 = arith.mulf %244, %248 : vector<8x32xf32>
    %250 = vector.extract_strided_slice %11 {offsets = [56, 0], sizes = [8, 128], strides = [1, 1]} : vector<64x128xf32> to vector<8x128xf32>
    %cst_82 = arith.constant dense<0.000000e+00> : vector<8x128xf32>
    %251 = tpu.matmul %249, %12, %cst_82 {dimension_numbers = #tpu.dot_dimension_numbers<[1], [0], [0], [1], [0, 0, 1, 1], [], []>} : vector<8x32xf32>, vector<32x128xf32>, vector<8x128xf32> -> vector<8x128xf32>
    %252 = arith.addf %250, %251 : vector<8x128xf32>
    %253 = vector.extract_strided_slice %252 {offsets = [0, 0], sizes = [8, 32], strides = [1, 1]} : vector<8x128xf32> to vector<8x32xf32>
    %cst_83 = arith.constant 0.000000e+00 : f32
    %254 = vector.broadcast %cst_83 : f32 to vector<8x32xf32>
    %255 = arith.subf %254, %253 : vector<8x32xf32>
    %256 = math.exp %255 : vector<8x32xf32>
    %cst_84 = arith.constant 1.000000e+00 : f32
    %257 = vector.broadcast %cst_84 : f32 to vector<8x32xf32>
    %258 = arith.addf %257, %256 : vector<8x32xf32>
    %cst_85 = arith.constant 1.000000e+00 : f32
    %259 = vector.broadcast %cst_85 : f32 to vector<8x32xf32>
    %260 = arith.divf %259, %258 : vector<8x32xf32>
    %261 = vector.extract_strided_slice %252 {offsets = [0, 32], sizes = [8, 32], strides = [1, 1]} : vector<8x128xf32> to vector<8x32xf32>
    %cst_86 = arith.constant 0.000000e+00 : f32
    %262 = vector.broadcast %cst_86 : f32 to vector<8x32xf32>
    %263 = arith.subf %262, %261 : vector<8x32xf32>
    %264 = math.exp %263 : vector<8x32xf32>
    %cst_87 = arith.constant 1.000000e+00 : f32
    %265 = vector.broadcast %cst_87 : f32 to vector<8x32xf32>
    %266 = arith.addf %265, %264 : vector<8x32xf32>
    %cst_88 = arith.constant 1.000000e+00 : f32
    %267 = vector.broadcast %cst_88 : f32 to vector<8x32xf32>
    %268 = arith.divf %267, %266 : vector<8x32xf32>
    %269 = vector.extract_strided_slice %252 {offsets = [0, 64], sizes = [8, 32], strides = [1, 1]} : vector<8x128xf32> to vector<8x32xf32>
    %270 = math.tanh %269 : vector<8x32xf32>
    %271 = vector.extract_strided_slice %252 {offsets = [0, 96], sizes = [8, 32], strides = [1, 1]} : vector<8x128xf32> to vector<8x32xf32>
    %cst_89 = arith.constant 0.000000e+00 : f32
    %272 = vector.broadcast %cst_89 : f32 to vector<8x32xf32>
    %273 = arith.subf %272, %271 : vector<8x32xf32>
    %274 = math.exp %273 : vector<8x32xf32>
    %cst_90 = arith.constant 1.000000e+00 : f32
    %275 = vector.broadcast %cst_90 : f32 to vector<8x32xf32>
    %276 = arith.addf %275, %274 : vector<8x32xf32>
    %cst_91 = arith.constant 1.000000e+00 : f32
    %277 = vector.broadcast %cst_91 : f32 to vector<8x32xf32>
    %278 = arith.divf %277, %276 : vector<8x32xf32>
    %279 = arith.mulf %268, %247 : vector<8x32xf32>
    %280 = arith.mulf %260, %270 : vector<8x32xf32>
    %281 = arith.addf %279, %280 : vector<8x32xf32>
    %282 = math.tanh %281 : vector<8x32xf32>
    %283 = arith.mulf %278, %282 : vector<8x32xf32>
    %284 = arith.mulf %45, %283 : vector<8x32xf32>
    %cst_92 = arith.constant dense<0.000000e+00> : vector<8xf32>
    %285 = vector.multi_reduction <add>, %284, %cst_92 [1] : vector<8x32xf32> to vector<8xf32>
    %286 = vector.shape_cast %285 : vector<8xf32> to vector<8x1xf32>
    %287 = arith.mulf %79, %283 : vector<8x32xf32>
    %cst_93 = arith.constant dense<0.000000e+00> : vector<8xf32>
    %288 = vector.multi_reduction <add>, %287, %cst_93 [1] : vector<8x32xf32> to vector<8xf32>
    %289 = vector.shape_cast %288 : vector<8xf32> to vector<8x1xf32>
    %290 = arith.mulf %113, %283 : vector<8x32xf32>
    %cst_94 = arith.constant dense<0.000000e+00> : vector<8xf32>
    %291 = vector.multi_reduction <add>, %290, %cst_94 [1] : vector<8x32xf32> to vector<8xf32>
    %292 = vector.shape_cast %291 : vector<8xf32> to vector<8x1xf32>
    %293 = arith.mulf %147, %283 : vector<8x32xf32>
    %cst_95 = arith.constant dense<0.000000e+00> : vector<8xf32>
    %294 = vector.multi_reduction <add>, %293, %cst_95 [1] : vector<8x32xf32> to vector<8xf32>
    %295 = vector.shape_cast %294 : vector<8xf32> to vector<8x1xf32>
    %296 = arith.mulf %181, %283 : vector<8x32xf32>
    %cst_96 = arith.constant dense<0.000000e+00> : vector<8xf32>
    %297 = vector.multi_reduction <add>, %296, %cst_96 [1] : vector<8x32xf32> to vector<8xf32>
    %298 = vector.shape_cast %297 : vector<8xf32> to vector<8x1xf32>
    %299 = arith.mulf %215, %283 : vector<8x32xf32>
    %cst_97 = arith.constant dense<0.000000e+00> : vector<8xf32>
    %300 = vector.multi_reduction <add>, %299, %cst_97 [1] : vector<8x32xf32> to vector<8xf32>
    %301 = vector.shape_cast %300 : vector<8xf32> to vector<8x1xf32>
    %302 = arith.mulf %249, %283 : vector<8x32xf32>
    %cst_98 = arith.constant dense<0.000000e+00> : vector<8xf32>
    %303 = vector.multi_reduction <add>, %302, %cst_98 [1] : vector<8x32xf32> to vector<8xf32>
    %304 = vector.shape_cast %303 : vector<8xf32> to vector<8x1xf32>
    %305 = arith.mulf %283, %283 : vector<8x32xf32>
    %cst_99 = arith.constant dense<0.000000e+00> : vector<8xf32>
    %306 = vector.multi_reduction <add>, %305, %cst_99 [1] : vector<8x32xf32> to vector<8xf32>
    %307 = vector.shape_cast %306 : vector<8xf32> to vector<8x1xf32>
    %308 = arith.maximumf %286, %289 : vector<8x1xf32>
    %309 = arith.maximumf %308, %292 : vector<8x1xf32>
    %310 = arith.maximumf %309, %295 : vector<8x1xf32>
    %311 = arith.maximumf %310, %298 : vector<8x1xf32>
    %312 = arith.maximumf %311, %301 : vector<8x1xf32>
    %313 = arith.maximumf %312, %304 : vector<8x1xf32>
    %314 = arith.maximumf %313, %307 : vector<8x1xf32>
    %315 = arith.subf %286, %314 : vector<8x1xf32>
    %316 = math.exp %315 : vector<8x1xf32>
    %317 = arith.subf %289, %314 : vector<8x1xf32>
    %318 = math.exp %317 : vector<8x1xf32>
    %319 = arith.subf %292, %314 : vector<8x1xf32>
    %320 = math.exp %319 : vector<8x1xf32>
    %321 = arith.subf %295, %314 : vector<8x1xf32>
    %322 = math.exp %321 : vector<8x1xf32>
    %323 = arith.subf %298, %314 : vector<8x1xf32>
    %324 = math.exp %323 : vector<8x1xf32>
    %325 = arith.subf %301, %314 : vector<8x1xf32>
    %326 = math.exp %325 : vector<8x1xf32>
    %327 = arith.subf %304, %314 : vector<8x1xf32>
    %328 = math.exp %327 : vector<8x1xf32>
    %329 = arith.subf %307, %314 : vector<8x1xf32>
    %330 = math.exp %329 : vector<8x1xf32>
    %331 = arith.addf %316, %318 : vector<8x1xf32>
    %332 = arith.addf %331, %320 : vector<8x1xf32>
    %333 = arith.addf %332, %322 : vector<8x1xf32>
    %334 = arith.addf %333, %324 : vector<8x1xf32>
    %335 = arith.addf %334, %326 : vector<8x1xf32>
    %336 = arith.addf %335, %328 : vector<8x1xf32>
    %337 = arith.addf %336, %330 : vector<8x1xf32>
    %338 = tpu.reciprocal %337 : vector<8x1xf32> -> vector<8x1xf32>
    %339 = arith.mulf %316, %338 : vector<8x1xf32>
    %340 = vector.broadcast %339 : vector<8x1xf32> to vector<8x32xf32>
    %341 = arith.mulf %340, %45 : vector<8x32xf32>
    %342 = arith.mulf %318, %338 : vector<8x1xf32>
    %343 = vector.broadcast %342 : vector<8x1xf32> to vector<8x32xf32>
    %344 = arith.mulf %343, %79 : vector<8x32xf32>
    %345 = arith.addf %341, %344 : vector<8x32xf32>
    %346 = arith.mulf %320, %338 : vector<8x1xf32>
    %347 = vector.broadcast %346 : vector<8x1xf32> to vector<8x32xf32>
    %348 = arith.mulf %347, %113 : vector<8x32xf32>
    %349 = arith.addf %345, %348 : vector<8x32xf32>
    %350 = arith.mulf %322, %338 : vector<8x1xf32>
    %351 = vector.broadcast %350 : vector<8x1xf32> to vector<8x32xf32>
    %352 = arith.mulf %351, %147 : vector<8x32xf32>
    %353 = arith.addf %349, %352 : vector<8x32xf32>
    %354 = arith.mulf %324, %338 : vector<8x1xf32>
    %355 = vector.broadcast %354 : vector<8x1xf32> to vector<8x32xf32>
    %356 = arith.mulf %355, %181 : vector<8x32xf32>
    %357 = arith.addf %353, %356 : vector<8x32xf32>
    %358 = arith.mulf %326, %338 : vector<8x1xf32>
    %359 = vector.broadcast %358 : vector<8x1xf32> to vector<8x32xf32>
    %360 = arith.mulf %359, %215 : vector<8x32xf32>
    %361 = arith.addf %357, %360 : vector<8x32xf32>
    %362 = arith.mulf %328, %338 : vector<8x1xf32>
    %363 = vector.broadcast %362 : vector<8x1xf32> to vector<8x32xf32>
    %364 = arith.mulf %363, %249 : vector<8x32xf32>
    %365 = arith.addf %361, %364 : vector<8x32xf32>
    %366 = arith.mulf %330, %338 : vector<8x1xf32>
    %367 = vector.broadcast %366 : vector<8x1xf32> to vector<8x32xf32>
    %368 = arith.mulf %367, %283 : vector<8x32xf32>
    %369 = arith.addf %365, %368 : vector<8x32xf32>
    %370 = tpu.iota {dimensions = array<i32: 0>} : vector<8x1xi32>
    %cst_100 = arith.constant 0.000000e+00 : f32
    %371 = vector.broadcast %cst_100 : f32 to vector<8x1xf32>
    %cst_101 = arith.constant 0.000000e+00 : f32
    %372 = vector.broadcast %cst_101 : f32 to vector<8x1xf32>
    %c0_i32 = arith.constant 0 : i32
    %373 = vector.broadcast %c0_i32 : i32 to vector<8x1xi32>
    %374 = arith.cmpi sge, %370, %373 : vector<8x1xi32>
    %c4_i32 = arith.constant 4 : i32
    %375 = vector.broadcast %c4_i32 : i32 to vector<8x1xi32>
    %376 = arith.cmpi slt, %370, %375 : vector<8x1xi32>
    %377 = arith.andi %374, %376 : vector<8x1xi1>
    %378 = arith.extui %377 : vector<8x1xi1> to vector<8x1xi32>
    %379 = arith.sitofp %378 : vector<8x1xi32> to vector<8x1xf32>
    %380 = vector.broadcast %379 : vector<8x1xf32> to vector<8x32xf32>
    %381 = arith.mulf %369, %380 : vector<8x32xf32>
    %cst_102 = arith.constant dense<0.000000e+00> : vector<8xf32>
    %382 = vector.multi_reduction <add>, %381, %cst_102 [1] : vector<8x32xf32> to vector<8xf32>
    %383 = vector.shape_cast %382 : vector<8xf32> to vector<8x1xf32>
    %cst_103 = arith.constant dense<0.000000e+00> : vector<1xf32>
    %384 = vector.multi_reduction <add>, %383, %cst_103 [0] : vector<8x1xf32> to vector<1xf32>
    %385 = vector.shape_cast %384 : vector<1xf32> to vector<1x1xf32>
    %cst_104 = arith.constant 1.280000e+02 : f32
    %386 = vector.broadcast %cst_104 : f32 to vector<1x1xf32>
    %387 = arith.divf %385, %386 : vector<1x1xf32>
    %388 = vector.broadcast %387 : vector<1x1xf32> to vector<8x32xf32>
    %389 = arith.subf %369, %388 : vector<8x32xf32>
    %390 = arith.mulf %389, %389 : vector<8x32xf32>
    %391 = vector.broadcast %379 : vector<8x1xf32> to vector<8x32xf32>
    %392 = arith.mulf %390, %391 : vector<8x32xf32>
    %cst_105 = arith.constant dense<0.000000e+00> : vector<8xf32>
    %393 = vector.multi_reduction <add>, %392, %cst_105 [1] : vector<8x32xf32> to vector<8xf32>
    %394 = vector.shape_cast %393 : vector<8xf32> to vector<8x1xf32>
    %cst_106 = arith.constant dense<0.000000e+00> : vector<1xf32>
    %395 = vector.multi_reduction <add>, %394, %cst_106 [0] : vector<8x1xf32> to vector<1xf32>
    %396 = vector.shape_cast %395 : vector<1xf32> to vector<1x1xf32>
    %cst_107 = arith.constant 1.270000e+02 : f32
    %397 = vector.broadcast %cst_107 : f32 to vector<1x1xf32>
    %398 = arith.divf %396, %397 : vector<1x1xf32>
    %399 = math.sqrt %398 : vector<1x1xf32>
    %cst_108 = arith.constant 9.99999971E-10 : f32
    %400 = vector.broadcast %cst_108 : f32 to vector<1x1xf32>
    %401 = arith.addf %399, %400 : vector<1x1xf32>
    %402 = tpu.reciprocal %401 : vector<1x1xf32> -> vector<1x1xf32>
    %403 = vector.broadcast %387 : vector<1x1xf32> to vector<8x1xf32>
    %404 = arith.mulf %379, %403 : vector<8x1xf32>
    %405 = arith.addf %371, %404 : vector<8x1xf32>
    %406 = vector.broadcast %402 : vector<1x1xf32> to vector<8x1xf32>
    %407 = arith.mulf %379, %406 : vector<8x1xf32>
    %408 = arith.addf %372, %407 : vector<8x1xf32>
    %c4_i32_109 = arith.constant 4 : i32
    %409 = vector.broadcast %c4_i32_109 : i32 to vector<8x1xi32>
    %410 = arith.cmpi sge, %370, %409 : vector<8x1xi32>
    %c8_i32 = arith.constant 8 : i32
    %411 = vector.broadcast %c8_i32 : i32 to vector<8x1xi32>
    %412 = arith.cmpi slt, %370, %411 : vector<8x1xi32>
    %413 = arith.andi %410, %412 : vector<8x1xi1>
    %414 = arith.extui %413 : vector<8x1xi1> to vector<8x1xi32>
    %415 = arith.sitofp %414 : vector<8x1xi32> to vector<8x1xf32>
    %416 = vector.broadcast %415 : vector<8x1xf32> to vector<8x32xf32>
    %417 = arith.mulf %369, %416 : vector<8x32xf32>
    %cst_110 = arith.constant dense<0.000000e+00> : vector<8xf32>
    %418 = vector.multi_reduction <add>, %417, %cst_110 [1] : vector<8x32xf32> to vector<8xf32>
    %419 = vector.shape_cast %418 : vector<8xf32> to vector<8x1xf32>
    %cst_111 = arith.constant dense<0.000000e+00> : vector<1xf32>
    %420 = vector.multi_reduction <add>, %419, %cst_111 [0] : vector<8x1xf32> to vector<1xf32>
    %421 = vector.shape_cast %420 : vector<1xf32> to vector<1x1xf32>
    %cst_112 = arith.constant 1.280000e+02 : f32
    %422 = vector.broadcast %cst_112 : f32 to vector<1x1xf32>
    %423 = arith.divf %421, %422 : vector<1x1xf32>
    %424 = vector.broadcast %423 : vector<1x1xf32> to vector<8x32xf32>
    %425 = arith.subf %369, %424 : vector<8x32xf32>
    %426 = arith.mulf %425, %425 : vector<8x32xf32>
    %427 = vector.broadcast %415 : vector<8x1xf32> to vector<8x32xf32>
    %428 = arith.mulf %426, %427 : vector<8x32xf32>
    %cst_113 = arith.constant dense<0.000000e+00> : vector<8xf32>
    %429 = vector.multi_reduction <add>, %428, %cst_113 [1] : vector<8x32xf32> to vector<8xf32>
    %430 = vector.shape_cast %429 : vector<8xf32> to vector<8x1xf32>
    %cst_114 = arith.constant dense<0.000000e+00> : vector<1xf32>
    %431 = vector.multi_reduction <add>, %430, %cst_114 [0] : vector<8x1xf32> to vector<1xf32>
    %432 = vector.shape_cast %431 : vector<1xf32> to vector<1x1xf32>
    %cst_115 = arith.constant 1.270000e+02 : f32
    %433 = vector.broadcast %cst_115 : f32 to vector<1x1xf32>
    %434 = arith.divf %432, %433 : vector<1x1xf32>
    %435 = math.sqrt %434 : vector<1x1xf32>
    %cst_116 = arith.constant 9.99999971E-10 : f32
    %436 = vector.broadcast %cst_116 : f32 to vector<1x1xf32>
    %437 = arith.addf %435, %436 : vector<1x1xf32>
    %438 = tpu.reciprocal %437 : vector<1x1xf32> -> vector<1x1xf32>
    %439 = vector.broadcast %423 : vector<1x1xf32> to vector<8x1xf32>
    %440 = arith.mulf %415, %439 : vector<8x1xf32>
    %441 = arith.addf %405, %440 : vector<8x1xf32>
    %442 = vector.broadcast %438 : vector<1x1xf32> to vector<8x1xf32>
    %443 = arith.mulf %415, %442 : vector<8x1xf32>
    %444 = arith.addf %408, %443 : vector<8x1xf32>
    %445 = vector.broadcast %441 : vector<8x1xf32> to vector<8x32xf32>
    %446 = arith.subf %369, %445 : vector<8x32xf32>
    %447 = vector.broadcast %444 : vector<8x1xf32> to vector<8x32xf32>
    %448 = arith.mulf %446, %447 : vector<8x32xf32>
    %c0_117 = arith.constant 0 : index
    %c0_118 = arith.constant 0 : index
    %449 = vector.load %arg6[%c0_117, %c0_118] : memref<8x32xf32, #tpu.memory_space<vmem>>, vector<8x32xf32>
    %450 = arith.mulf %449, %448 : vector<8x32xf32>
    %c0_119 = arith.constant 0 : index
    %c0_120 = arith.constant 0 : index
    %451 = vector.load %arg7[%c0_119, %c0_120] : memref<8x32xf32, #tpu.memory_space<vmem>>, vector<8x32xf32>
    %452 = arith.addf %450, %451 : vector<8x32xf32>
    %c0_121 = arith.constant 0 : index
    %c0_122 = arith.constant 0 : index
    %453 = vector.load %arg8[%c0_121, %c0_122] : memref<8x32xf32, #tpu.memory_space<vmem>>, vector<8x32xf32>
    tpu.vector_store %arg8[%c0_121, %c0_122], %452 {strides = array<i32>} : memref<8x32xf32, #tpu.memory_space<vmem>>, vector<8x32xf32>,
    return
  }
}

</mosaic_0001>

<llo_original>
// kernel: tpu_custom_call.1
$region0: #{tpu_custom_call.1}
  #allocation0 [shape = 'u32[]', space=smem, size = 0x4, offset = 0x4, fixed_abs, tag = 'smem constant byte address 0x4 - core index']
  #allocation1 [shape = 'u32[144,128]{1,0:T(1,128)}', space=vmem, size = 0x12000, scoped, tag = 'internal scratch']
  %s0 = inlined_call_operand.vmem [shape: f32[64,16], index: 0, kind: input, shape index: {}]
  %s1 = inlined_call_operand.vmem [shape: f32[16,32], index: 1, kind: input, shape index: {}]
  %s2 = inlined_call_operand.vmem [shape: f32[1,32], index: 2, kind: input, shape index: {}]
  %s3 = inlined_call_operand.vmem [shape: f32[32,128], index: 3, kind: input, shape index: {}]
  %s4 = inlined_call_operand.vmem [shape: f32[32,128], index: 4, kind: input, shape index: {}]
  %s5 = inlined_call_operand.vmem [shape: f32[1,128], index: 5, kind: input, shape index: {}]
  %s6 = inlined_call_operand.vmem [shape: f32[8,32], index: 6, kind: input, shape index: {}]
  %s7 = inlined_call_operand.vmem [shape: f32[8,32], index: 7, kind: input, shape index: {}]
  %s8 = inlined_call_operand.hbm [shape: f32[8,32], index: 8, kind: output, shape index: {}]
  %s9 = sld [smem:[#allocation0]]
  $region42: #{tpu_custom_call.1} parent=0
    _
  %s11 = ssub.s32 1, %s9
  %s12 = scalar_select 0, %s11, %s9
  $region1: #{tpu_custom_call.1} parent=0
    #allocation2 [shape = 'u8[4096]{0}', space=vmem, size = 0x1000, scoped, tag = 'output window, operand 0, single buffered']
    #allocation3 [shape = 's32[1]{0}', space=sflag, size = 0x4, scoped, tag = 'scoped memory for tpu_custom_call.1']
    %13 = vsyncpa [#allocation3], 0
    // Predicated region
    $region2: #{tpu_custom_call.1} parent=1 // pred_check
      _
    $region3: #{tpu_custom_call.1} parent=1 // pred_check_branch
      %15 = sbr.rel (0) target = $region5
    $region4: #{tpu_custom_call.1} parent=1 // pred_region
      _
    $region5: #{tpu_custom_call.1} parent=1 // pred_fallthru
      _
    // Predicated region
    $region6: #{tpu_custom_call.1} parent=1 // pred_check
      _
    $region7: #{tpu_custom_call.1} parent=1 // pred_check_branch
      %17 = sbr.rel (0) target = $region9
    $region8: #{tpu_custom_call.1} parent=1 // pred_region
      _
    $region9: #{tpu_custom_call.1} parent=1 // pred_fallthru
      _
    // Predicated region
    $region10: #{tpu_custom_call.1} parent=1 // pred_check
      _
    $region11: #{tpu_custom_call.1} parent=1 // pred_check_branch
      %19 = sbr.rel (0) target = $region13
    $region12: #{tpu_custom_call.1} parent=1 // pred_region
      _
    $region13: #{tpu_custom_call.1} parent=1 // pred_fallthru
      _
    // Predicated region
    $region14: #{tpu_custom_call.1} parent=1 // pred_check
      _
    $region15: #{tpu_custom_call.1} parent=1 // pred_check_branch
      %21 = sbr.rel (0) target = $region17
    $region16: #{tpu_custom_call.1} parent=1 // pred_region
      _
    $region17: #{tpu_custom_call.1} parent=1 // pred_fallthru
      _
    // Predicated region
    $region18: #{tpu_custom_call.1} parent=1 // pred_check
      _
    $region19: #{tpu_custom_call.1} parent=1 // pred_check_branch
      %23 = sbr.rel (0) target = $region21
    $region20: #{tpu_custom_call.1} parent=1 // pred_region
      _
    $region21: #{tpu_custom_call.1} parent=1 // pred_fallthru
      _
    // Predicated region
    $region22: #{tpu_custom_call.1} parent=1 // pred_check
      _
    $region23: #{tpu_custom_call.1} parent=1 // pred_check_branch
      %25 = sbr.rel (0) target = $region25
    $region24: #{tpu_custom_call.1} parent=1 // pred_region
      _
    $region25: #{tpu_custom_call.1} parent=1 // pred_fallthru
      _
    // Predicated region
    $region26: #{tpu_custom_call.1} parent=1 // pred_check
      _
    $region27: #{tpu_custom_call.1} parent=1 // pred_check_branch
      %27 = sbr.rel (0) target = $region29
    $region28: #{tpu_custom_call.1} parent=1 // pred_region
      _
    $region29: #{tpu_custom_call.1} parent=1 // pred_fallthru
      _
    // Predicated region
    $region30: #{tpu_custom_call.1} parent=1 // pred_check
      _
    $region31: #{tpu_custom_call.1} parent=1 // pred_check_branch
      %29 = sbr.rel (0) target = $region33
    $region32: #{tpu_custom_call.1} parent=1 // pred_region
      _
    $region33: #{tpu_custom_call.1} parent=1 // pred_fallthru
      _
    %v30 = vld [vmem:[%s0] sm:$0xff]
    %v31 = vld [vmem:[%s0 + $0x8] sm:$0xff]
    %v32 = vld [vmem:[%s0 + $0x10] sm:$0xff]
    %v33 = vld [vmem:[%s0 + $0x18] sm:$0xff]
    %v34 = vld [vmem:[%s0 + $0x20] sm:$0xff]
    %v35 = vld [vmem:[%s0 + $0x28] sm:$0xff]
    %v36 = vld [vmem:[%s0 + $0x30] sm:$0xff]
    %v37 = vld [vmem:[%s0 + $0x38] sm:$0xff]
    %v38 = vld [vmem:[%s1] sm:$0xff]
    %v39 = vld [vmem:[%s1 + $0x8] sm:$0xff]
    %v40 = vld [vmem:[%s2] sm:$0x1]
    %v42 = vlaneseq
    %v43 = vshrl.u32 %v42, 7
    %v44 = vsub.s32 0, %v43
    %v45 = vrot.slane %v40, %v44
    %vm47 = vcmask 130048
    %v49 = vsel %vm47, %v30, 0
    %v52 = vsel %vm47, %v31, 0
    %v55 = vsel %vm47, %v32, 0
    %v58 = vsel %vm47, %v33, 0
    %v61 = vsel %vm47, %v34, 0
    %v64 = vsel %vm47, %v35, 0
    %v67 = vsel %vm47, %v36, 0
    %v70 = vsel %vm47, %v37, 0
    %72 = vmatprep.subr.mxu0 0.0
    %73 = vmatpush1.msra.mxu0 %v38
    %74 = vmatprep.subr.mxu0 0.0
    %75 = vmatpush1.msra.mxu0 %v39
    %76 = vmatprep.subr.mxu0 0.0
    %77 = vmatpush1.msra.mxu0 0.0
    %78 = vmatprep.subr.mxu0 0.0
    %79 = vmatpush1.msra.mxu0 0.0
    %80 = vmatprep.subr.mxu0 0.0
    %81 = vmatpush1.msra.mxu0 0.0
    %82 = vmatprep.subr.mxu0 0.0
    %83 = vmatpush1.msra.mxu0 0.0
    %84 = vmatprep.subr.mxu0 0.0
    %85 = vmatpush1.msra.mxu0 0.0
    %86 = vmatprep.subr.mxu0 0.0
    %87 = vmatpush1.msra.mxu0 0.0
    %88 = vmatprep.subr.mxu0 0.0
    %89 = vmatpush1.msra.mxu0 0.0
    %90 = vmatprep.subr.mxu0 0.0
    %91 = vmatpush1.msra.mxu0 0.0
    %92 = vmatprep.subr.mxu0 0.0
    %93 = vmatpush1.msra.mxu0 0.0
    %94 = vmatprep.subr.mxu0 0.0
    %95 = vmatpush1.msra.mxu0 0.0
    %96 = vmatprep.subr.mxu0 0.0
    %97 = vmatpush1.msra.mxu0 0.0
    %98 = vmatprep.subr.mxu0 0.0
    %99 = vmatpush1.msra.mxu0 0.0
    %100 = vmatprep.subr.mxu0 0.0
    %101 = vmatpush1.msra.mxu0 0.0
    %102 = vmatprep.subr.mxu0 0.0
    %103 = vmatpush1.msra.mxu0 0.0
    %104 = vmatprep.subr.mxu0 0.0
    %105 = vmatpush1.msra.mxu0 0.0
    %106 = vmatprep.subr.mxu0 0.0
    %107 = vmatpush1.msra.mxu0 0.0
    %108 = vmatprep.subr.mxu0 0.0
    %109 = vmatpush1.msra.mxu0 0.0
    %110 = vmatprep.subr.mxu0 0.0
    %111 = vmatpush1.msra.mxu0 0.0
    %112 = vmatprep.subr.mxu0 0.0
    %113 = vmatpush1.msra.mxu0 0.0
    %114 = vmatprep.subr.mxu0 0.0
    %115 = vmatpush1.msra.mxu0 0.0
    %116 = vmatprep.subr.mxu0 0.0
    %117 = vmatpush1.msra.mxu0 0.0
    %118 = vmatprep.subr.mxu0 0.0
    %119 = vmatpush1.msra.mxu0 0.0
    %120 = vmatprep.subr.mxu0 0.0
    %121 = vmatpush1.msra.mxu0 0.0
    %122 = vmatprep.subr.mxu0 0.0
    %123 = vmatpush1.msra.mxu0 0.0
    %124 = vmatprep.subr.mxu0 0.0
    %125 = vmatpush1.msra.mxu0 0.0
    %126 = vmatprep.subr.mxu0 0.0
    %127 = vmatpush1.msra.mxu0 0.0
    %128 = vmatprep.subr.mxu0 0.0
    %129 = vmatpush1.msra.mxu0 0.0
    %130 = vmatprep.subr.mxu0 0.0
    %131 = vmatpush1.msra.mxu0 0.0
    %132 = vmatprep.subr.mxu0 0.0
    %133 = vmatpush1.msra.mxu0 0.0
    %134 = vmatprep.subr.mxu0 0.0
    %135 = vmatpush1.msra.mxu0 0.0
    %136 = vmatprep.mubr.f32.mxu0 0.0
    %137 = vmatmul.mubr.f32.gmra.mrb[0].mxu0 %v49
    %v138 = vpop.f32.mrb[0].mxu0
    %v139 = vadd.f32 %v45, %v138
    %v140 = vpop.f32.mrb[0].mxu0
    %141 = vmatprep.mubr.f32.mxu0 0.0
    %142 = vmatmul.mubr.f32.gmra.mrb[0].mxu0 %v52
    %v143 = vpop.f32.mrb[0].mxu0
    %v144 = vadd.f32 %v45, %v143
    %v145 = vpop.f32.mrb[0].mxu0
    %146 = vmatprep.mubr.f32.mxu0 0.0
    %147 = vmatmul.mubr.f32.gmra.mrb[0].mxu0 %v55
    %v148 = vpop.f32.mrb[0].mxu0
    %v149 = vadd.f32 %v45, %v148
    %v150 = vpop.f32.mrb[0].mxu0
    %151 = vmatprep.mubr.f32.mxu0 0.0
    %152 = vmatmul.mubr.f32.gmra.mrb[0].mxu0 %v58
    %v153 = vpop.f32.mrb[0].mxu0
    %v154 = vadd.f32 %v45, %v153
    %v155 = vpop.f32.mrb[0].mxu0
    %156 = vmatprep.mubr.f32.mxu0 0.0
    %157 = vmatmul.mubr.f32.gmra.mrb[0].mxu0 %v61
    %v158 = vpop.f32.mrb[0].mxu0
    %v159 = vadd.f32 %v45, %v158
    %v160 = vpop.f32.mrb[0].mxu0
    %161 = vmatprep.mubr.f32.mxu0 0.0
    %162 = vmatmul.mubr.f32.gmra.mrb[0].mxu0 %v64
    %v163 = vpop.f32.mrb[0].mxu0
    %v164 = vadd.f32 %v45, %v163
    %v165 = vpop.f32.mrb[0].mxu0
    %166 = vmatprep.mubr.f32.mxu0 0.0
    %167 = vmatmul.mubr.f32.gmra.mrb[0].mxu0 %v67
    %v168 = vpop.f32.mrb[0].mxu0
    %v169 = vadd.f32 %v45, %v168
    %v170 = vpop.f32.mrb[0].mxu0
    %171 = vmatprep.mubr.f32.mxu0 0.0
    %172 = vmatmul.mubr.f32.gmra.mrb[0].mxu0 %v70
    %v173 = vpop.f32.mrb[0].mxu0
    %v174 = vadd.f32 %v45, %v173
    %v175 = vpop.f32.mrb[0].mxu0
    %176 = vdwg.mxu0
    %v177 = vtanh.pop %v139
    %v178 = vtanh.pop %v144
    %v179 = vtanh.pop %v149
    %v180 = vtanh.pop %v154
    %v181 = vtanh.pop %v159
    %v182 = vtanh.pop %v164
    %v183 = vtanh.pop %v169
    %v184 = vtanh.pop %v174
    %v185 = vld [vmem:[%s3] sm:$0xff]
    %v186 = vld [vmem:[%s3 + $0x8] sm:$0xff]
    %v187 = vld [vmem:[%s3 + $0x10] sm:$0xff]
    %v188 = vld [vmem:[%s3 + $0x18] sm:$0xff]
    %v189 = vld [vmem:[%s5] sm:$0x1]
    %v191 = vlaneseq
    %v192 = vshrl.u32 %v191, 7
    %v193 = vsub.s32 0, %v192
    %v194 = vrot.slane %v189, %v193
    %vm196 = vcmask 261120
    %v198 = vsel %vm196, %v177, 0
    %v201 = vsel %vm196, %v178, 0
    %v204 = vsel %vm196, %v179, 0
    %v207 = vsel %vm196, %v180, 0
    %v210 = vsel %vm196, %v181, 0
    %v213 = vsel %vm196, %v182, 0
    %v216 = vsel %vm196, %v183, 0
    %v219 = vsel %vm196, %v184, 0
    %221 = vmatprep.subr.mxu0 0.0
    %222 = vmatpush1.msra.mxu0 %v185
    %223 = vmatprep.subr.mxu0 0.0
    %224 = vmatpush1.msra.mxu0 %v186
    %225 = vmatprep.subr.mxu0 0.0
    %226 = vmatpush1.msra.mxu0 %v187
    %227 = vmatprep.subr.mxu0 0.0
    %228 = vmatpush1.msra.mxu0 %v188
    %229 = vmatprep.subr.mxu0 0.0
    %230 = vmatpush1.msra.mxu0 0.0
    %231 = vmatprep.subr.mxu0 0.0
    %232 = vmatpush1.msra.mxu0 0.0
    %233 = vmatprep.subr.mxu0 0.0
    %234 = vmatpush1.msra.mxu0 0.0
    %235 = vmatprep.subr.mxu0 0.0
    %236 = vmatpush1.msra.mxu0 0.0
    %237 = vmatprep.subr.mxu0 0.0
    %238 = vmatpush1.msra.mxu0 0.0
    %239 = vmatprep.subr.mxu0 0.0
    %240 = vmatpush1.msra.mxu0 0.0
    %241 = vmatprep.subr.mxu0 0.0
    %242 = vmatpush1.msra.mxu0 0.0
    %243 = vmatprep.subr.mxu0 0.0
    %244 = vmatpush1.msra.mxu0 0.0
    %245 = vmatprep.subr.mxu0 0.0
    %246 = vmatpush1.msra.mxu0 0.0
    %247 = vmatprep.subr.mxu0 0.0
    %248 = vmatpush1.msra.mxu0 0.0
    %249 = vmatprep.subr.mxu0 0.0
    %250 = vmatpush1.msra.mxu0 0.0
    %251 = vmatprep.subr.mxu0 0.0
    %252 = vmatpush1.msra.mxu0 0.0
    %253 = vmatprep.subr.mxu0 0.0
    %254 = vmatpush1.msra.mxu0 0.0
    %255 = vmatprep.subr.mxu0 0.0
    %256 = vmatpush1.msra.mxu0 0.0
    %257 = vmatprep.subr.mxu0 0.0
    %258 = vmatpush1.msra.mxu0 0.0
    %259 = vmatprep.subr.mxu0 0.0
    %260 = vmatpush1.msra.mxu0 0.0
    %261 = vmatprep.subr.mxu0 0.0
    %262 = vmatpush1.msra.mxu0 0.0
    %263 = vmatprep.subr.mxu0 0.0
    %264 = vmatpush1.msra.mxu0 0.0
    %265 = vmatprep.subr.mxu0 0.0
    %266 = vmatpush1.msra.mxu0 0.0
    %267 = vmatprep.subr.mxu0 0.0
    %268 = vmatpush1.msra.mxu0 0.0
    %269 = vmatprep.subr.mxu0 0.0
    %270 = vmatpush1.msra.mxu0 0.0
    %271 = vmatprep.subr.mxu0 0.0
    %272 = vmatpush1.msra.mxu0 0.0
    %273 = vmatprep.subr.mxu0 0.0
    %274 = vmatpush1.msra.mxu0 0.0
    %275 = vmatprep.subr.mxu0 0.0
    %276 = vmatpush1.msra.mxu0 0.0
    %277 = vmatprep.subr.mxu0 0.0
    %278 = vmatpush1.msra.mxu0 0.0
    %279 = vmatprep.subr.mxu0 0.0
    %280 = vmatpush1.msra.mxu0 0.0
    %281 = vmatprep.subr.mxu0 0.0
    %282 = vmatpush1.msra.mxu0 0.0
    %283 = vmatprep.subr.mxu0 0.0
    %284 = vmatpush1.msra.mxu0 0.0
    %285 = vmatprep.mubr.f32.mxu0 0.0
    %286 = vmatmul.mubr.f32.gmra.mrb[0].mxu0 %v198
    %v287 = vpop.f32.mrb[0].mxu0
    %v288 = vadd.f32 %v194, %v287
    %v289 = vpop.f32.mrb[0].mxu0
    %290 = vmatprep.mubr.f32.mxu0 0.0
    %291 = vmatmul.mubr.f32.gmra.mrb[0].mxu0 %v201
    %v292 = vpop.f32.mrb[0].mxu0
    %v293 = vadd.f32 %v194, %v292
    %v294 = vpop.f32.mrb[0].mxu0
    %295 = vmatprep.mubr.f32.mxu0 0.0
    %296 = vmatmul.mubr.f32.gmra.mrb[0].mxu0 %v204
    %v297 = vpop.f32.mrb[0].mxu0
    %v298 = vadd.f32 %v194, %v297
    %v299 = vpop.f32.mrb[0].mxu0
    %300 = vmatprep.mubr.f32.mxu0 0.0
    %301 = vmatmul.mubr.f32.gmra.mrb[0].mxu0 %v207
    %v302 = vpop.f32.mrb[0].mxu0
    %v303 = vadd.f32 %v194, %v302
    %v304 = vpop.f32.mrb[0].mxu0
    %305 = vmatprep.mubr.f32.mxu0 0.0
    %306 = vmatmul.mubr.f32.gmra.mrb[0].mxu0 %v210
    %v307 = vpop.f32.mrb[0].mxu0
    %v308 = vadd.f32 %v194, %v307
    %v309 = vpop.f32.mrb[0].mxu0
    %310 = vmatprep.mubr.f32.mxu0 0.0
    %311 = vmatmul.mubr.f32.gmra.mrb[0].mxu0 %v213
    %v312 = vpop.f32.mrb[0].mxu0
    %v313 = vadd.f32 %v194, %v312
    %v314 = vpop.f32.mrb[0].mxu0
    %315 = vmatprep.mubr.f32.mxu0 0.0
    %316 = vmatmul.mubr.f32.gmra.mrb[0].mxu0 %v216
    %v317 = vpop.f32.mrb[0].mxu0
    %v318 = vadd.f32 %v194, %v317
    %v319 = vpop.f32.mrb[0].mxu0
    %320 = vmatprep.mubr.f32.mxu0 0.0
    %321 = vmatmul.mubr.f32.gmra.mrb[0].mxu0 %v219
    %v322 = vpop.f32.mrb[0].mxu0
    %v323 = vadd.f32 %v194, %v322
    %v324 = vpop.f32.mrb[0].mxu0
    %325 = vdwg.mxu0
    %v326 = vld [vmem:[%s4] sm:$0xff]
    %v327 = vld [vmem:[%s4 + $0x8] sm:$0xff]
    %v328 = vld [vmem:[%s4 + $0x10] sm:$0xff]
    %v329 = vld [vmem:[%s4 + $0x18] sm:$0xff]
    %v330 = vsub.f32 0.0, %v288
    %v331 = vmul.f32 %v330, 1.442695
    %v332 = vpow.pop %v331
    %v333 = vadd.f32 %v332, 1.0
    %v334 = vrcp.pop %v333
    %v335 = vmul.f32 1.0, %v334
    %v336 = vtanh.pop %v288
    %v337 = vmul.f32 %v335, 0.0
    %339 = vrot.lane.b32.xlu0 %v336, 64
    %v340 = vpop.permute.xlu0 %339
    %v342 = vmul.f32 %v335, %v340
    %344 = vrot.lane.b32.xlu0 %v342, 32
    %v345 = vpop.permute.xlu0 %344
    %v347 = vadd.f32 %v337, %v345
    %v348 = vtanh.pop %v347
    %350 = vrot.lane.b32.xlu0 %v348, 64
    %v351 = vpop.permute.xlu0 %350
    %v353 = vmul.f32 %v335, %v351
    %355 = vrot.lane.b32.xlu0 %v353, 32
    %v356 = vpop.permute.xlu0 %355
    %v357 = vsel %vm196, %v356, 0
    %359 = vmatprep.subr.mxu0 0.0
    %360 = vmatpush1.msra.mxu0 %v326
    %361 = vmatprep.subr.mxu0 0.0
    %362 = vmatpush1.msra.mxu0 %v327
    %363 = vmatprep.subr.mxu0 0.0
    %364 = vmatpush1.msra.mxu0 %v328
    %365 = vmatprep.subr.mxu0 0.0
    %366 = vmatpush1.msra.mxu0 %v329
    %367 = vmatprep.subr.mxu0 0.0
    %368 = vmatpush1.msra.mxu0 0.0
    %369 = vmatprep.subr.mxu0 0.0
    %370 = vmatpush1.msra.mxu0 0.0
    %371 = vmatprep.subr.mxu0 0.0
    %372 = vmatpush1.msra.mxu0 0.0
    %373 = vmatprep.subr.mxu0 0.0
    %374 = vmatpush1.msra.mxu0 0.0
    %375 = vmatprep.subr.mxu0 0.0
    %376 = vmatpush1.msra.mxu0 0.0
    %377 = vmatprep.subr.mxu0 0.0
    %378 = vmatpush1.msra.mxu0 0.0
    %379 = vmatprep.subr.mxu0 0.0
    %380 = vmatpush1.msra.mxu0 0.0
    %381 = vmatprep.subr.mxu0 0.0
    %382 = vmatpush1.msra.mxu0 0.0
    %383 = vmatprep.subr.mxu0 0.0
    %384 = vmatpush1.msra.mxu0 0.0
    %385 = vmatprep.subr.mxu0 0.0
    %386 = vmatpush1.msra.mxu0 0.0
    %387 = vmatprep.subr.mxu0 0.0
    %388 = vmatpush1.msra.mxu0 0.0
    %389 = vmatprep.subr.mxu0 0.0
    %390 = vmatpush1.msra.mxu0 0.0
    %391 = vmatprep.subr.mxu0 0.0
    %392 = vmatpush1.msra.mxu0 0.0
    %393 = vmatprep.subr.mxu0 0.0
    %394 = vmatpush1.msra.mxu0 0.0
    %395 = vmatprep.subr.mxu0 0.0
    %396 = vmatpush1.msra.mxu0 0.0
    %397 = vmatprep.subr.mxu0 0.0
    %398 = vmatpush1.msra.mxu0 0.0
    %399 = vmatprep.subr.mxu0 0.0
    %400 = vmatpush1.msra.mxu0 0.0
    %401 = vmatprep.subr.mxu0 0.0
    %402 = vmatpush1.msra.mxu0 0.0
    %403 = vmatprep.subr.mxu0 0.0
    %404 = vmatpush1.msra.mxu0 0.0
    %405 = vmatprep.subr.mxu0 0.0
    %406 = vmatpush1.msra.mxu0 0.0
    %407 = vmatprep.subr.mxu0 0.0
    %408 = vmatpush1.msra.mxu0 0.0
    %409 = vmatprep.subr.mxu0 0.0
    %410 = vmatpush1.msra.mxu0 0.0
    %411 = vmatprep.subr.mxu0 0.0
    %412 = vmatpush1.msra.mxu0 0.0
    %413 = vmatprep.subr.mxu0 0.0
    %414 = vmatpush1.msra.mxu0 0.0
    %415 = vmatprep.subr.mxu0 0.0
    %416 = vmatpush1.msra.mxu0 0.0
    %417 = vmatprep.subr.mxu0 0.0
    %418 = vmatpush1.msra.mxu0 0.0
    %419 = vmatprep.subr.mxu0 0.0
    %420 = vmatpush1.msra.mxu0 0.0
    %421 = vmatprep.subr.mxu0 0.0
    %422 = vmatpush1.msra.mxu0 0.0
    %423 = vmatprep.mubr.f32.mxu0 0.0
    %424 = vmatmul.mubr.f32.gmra.mrb[0].mxu0 %v357
    %v425 = vpop.f32.mrb[0].mxu0
    %v426 = vadd.f32 0.0, %v425
    %v427 = vpop.f32.mrb[0].mxu0
    %428 = vdwg.mxu0
    %v429 = vadd.f32 %v293, %v426
    %v430 = vsub.f32 0.0, %v429
    %v431 = vmul.f32 %v430, 1.442695
    %v432 = vpow.pop %v431
    %v433 = vadd.f32 %v432, 1.0
    %v434 = vrcp.pop %v433
    %v435 = vmul.f32 1.0, %v434
    %v436 = vtanh.pop %v429
    %v437 = vmul.f32 %v435, %v347
    %439 = vrot.lane.b32.xlu0 %v436, 64
    %v440 = vpop.permute.xlu0 %439
    %v442 = vmul.f32 %v435, %v440
    %444 = vrot.lane.b32.xlu0 %v442, 32
    %v445 = vpop.permute.xlu0 %444
    %v447 = vadd.f32 %v437, %v445
    %v448 = vtanh.pop %v447
    %450 = vrot.lane.b32.xlu0 %v448, 64
    %v451 = vpop.permute.xlu0 %450
    %v453 = vmul.f32 %v435, %v451
    %455 = vrot.lane.b32.xlu0 %v453, 32
    %v456 = vpop.permute.xlu0 %455
    %v457 = vsel %vm196, %v456, 0
    %459 = vmatprep.subr.mxu0 0.0
    %460 = vmatpush1.msra.mxu0 %v326
    %461 = vmatprep.subr.mxu0 0.0
    %462 = vmatpush1.msra.mxu0 %v327
    %463 = vmatprep.subr.mxu0 0.0
    %464 = vmatpush1.msra.mxu0 %v328
    %465 = vmatprep.subr.mxu0 0.0
    %466 = vmatpush1.msra.mxu0 %v329
    %467 = vmatprep.subr.mxu0 0.0
    %468 = vmatpush1.msra.mxu0 0.0
    %469 = vmatprep.subr.mxu0 0.0
    %470 = vmatpush1.msra.mxu0 0.0
    %471 = vmatprep.subr.mxu0 0.0
    %472 = vmatpush1.msra.mxu0 0.0
    %473 = vmatprep.subr.mxu0 0.0
    %474 = vmatpush1.msra.mxu0 0.0
    %475 = vmatprep.subr.mxu0 0.0
    %476 = vmatpush1.msra.mxu0 0.0
    %477 = vmatprep.subr.mxu0 0.0
    %478 = vmatpush1.msra.mxu0 0.0
    %479 = vmatprep.subr.mxu0 0.0
    %480 = vmatpush1.msra.mxu0 0.0
    %481 = vmatprep.subr.mxu0 0.0
    %482 = vmatpush1.msra.mxu0 0.0
    %483 = vmatprep.subr.mxu0 0.0
    %484 = vmatpush1.msra.mxu0 0.0
    %485 = vmatprep.subr.mxu0 0.0
    %486 = vmatpush1.msra.mxu0 0.0
    %487 = vmatprep.subr.mxu0 0.0
    %488 = vmatpush1.msra.mxu0 0.0
    %489 = vmatprep.subr.mxu0 0.0
    %490 = vmatpush1.msra.mxu0 0.0
    %491 = vmatprep.subr.mxu0 0.0
    %492 = vmatpush1.msra.mxu0 0.0
    %493 = vmatprep.subr.mxu0 0.0
    %494 = vmatpush1.msra.mxu0 0.0
    %495 = vmatprep.subr.mxu0 0.0
    %496 = vmatpush1.msra.mxu0 0.0
    %497 = vmatprep.subr.mxu0 0.0
    %498 = vmatpush1.msra.mxu0 0.0
    %499 = vmatprep.subr.mxu0 0.0
    %500 = vmatpush1.msra.mxu0 0.0
    %501 = vmatprep.subr.mxu0 0.0
    %502 = vmatpush1.msra.mxu0 0.0
    %503 = vmatprep.subr.mxu0 0.0
    %504 = vmatpush1.msra.mxu0 0.0
    %505 = vmatprep.subr.mxu0 0.0
    %506 = vmatpush1.msra.mxu0 0.0
    %507 = vmatprep.subr.mxu0 0.0
    %508 = vmatpush1.msra.mxu0 0.0
    %509 = vmatprep.subr.mxu0 0.0
    %510 = vmatpush1.msra.mxu0 0.0
    %511 = vmatprep.subr.mxu0 0.0
    %512 = vmatpush1.msra.mxu0 0.0
    %513 = vmatprep.subr.mxu0 0.0
    %514 = vmatpush1.msra.mxu0 0.0
    %515 = vmatprep.subr.mxu0 0.0
    %516 = vmatpush1.msra.mxu0 0.0
    %517 = vmatprep.subr.mxu0 0.0
    %518 = vmatpush1.msra.mxu0 0.0
    %519 = vmatprep.subr.mxu0 0.0
    %520 = vmatpush1.msra.mxu0 0.0
    %521 = vmatprep.subr.mxu0 0.0
    %522 = vmatpush1.msra.mxu0 0.0
    %523 = vmatprep.mubr.f32.mxu0 0.0
    %524 = vmatmul.mubr.f32.gmra.mrb[0].mxu0 %v457
    %v525 = vpop.f32.mrb[0].mxu0
    %v526 = vadd.f32 0.0, %v525
    %v527 = vpop.f32.mrb[0].mxu0
    %528 = vdwg.mxu0
    %v529 = vadd.f32 %v298, %v526
    %v530 = vsub.f32 0.0, %v529
    %v531 = vmul.f32 %v530, 1.442695
    %v532 = vpow.pop %v531
    %v533 = vadd.f32 %v532, 1.0
    %v534 = vrcp.pop %v533
    %v535 = vmul.f32 1.0, %v534
    %v536 = vtanh.pop %v529
    %v537 = vmul.f32 %v535, %v447
    %539 = vrot.lane.b32.xlu0 %v536, 64
    %v540 = vpop.permute.xlu0 %539
    %v542 = vmul.f32 %v535, %v540
    %544 = vrot.lane.b32.xlu0 %v542, 32
    %v545 = vpop.permute.xlu0 %544
    %v547 = vadd.f32 %v537, %v545
    %v548 = vtanh.pop %v547
    %550 = vrot.lane.b32.xlu0 %v548, 64
    %v551 = vpop.permute.xlu0 %550
    %v553 = vmul.f32 %v535, %v551
    %555 = vrot.lane.b32.xlu0 %v553, 32
    %v556 = vpop.permute.xlu0 %555
    %v557 = vsel %vm196, %v556, 0
    %559 = vmatprep.subr.mxu0 0.0
    %560 = vmatpush1.msra.mxu0 %v326
    %561 = vmatprep.subr.mxu0 0.0
    %562 = vmatpush1.msra.mxu0 %v327
    %563 = vmatprep.subr.mxu0 0.0
    %564 = vmatpush1.msra.mxu0 %v328
    %565 = vmatprep.subr.mxu0 0.0
    %566 = vmatpush1.msra.mxu0 %v329
    %567 = vmatprep.subr.mxu0 0.0
    %568 = vmatpush1.msra.mxu0 0.0
    %569 = vmatprep.subr.mxu0 0.0
    %570 = vmatpush1.msra.mxu0 0.0
    %571 = vmatprep.subr.mxu0 0.0
    %572 = vmatpush1.msra.mxu0 0.0
    %573 = vmatprep.subr.mxu0 0.0
    %574 = vmatpush1.msra.mxu0 0.0
    %575 = vmatprep.subr.mxu0 0.0
    %576 = vmatpush1.msra.mxu0 0.0
    %577 = vmatprep.subr.mxu0 0.0
    %578 = vmatpush1.msra.mxu0 0.0
    %579 = vmatprep.subr.mxu0 0.0
    %580 = vmatpush1.msra.mxu0 0.0
    %581 = vmatprep.subr.mxu0 0.0
    %582 = vmatpush1.msra.mxu0 0.0
    %583 = vmatprep.subr.mxu0 0.0
    %584 = vmatpush1.msra.mxu0 0.0
    %585 = vmatprep.subr.mxu0 0.0
    %586 = vmatpush1.msra.mxu0 0.0
    %587 = vmatprep.subr.mxu0 0.0
    %588 = vmatpush1.msra.mxu0 0.0
    %589 = vmatprep.subr.mxu0 0.0
    %590 = vmatpush1.msra.mxu0 0.0
    %591 = vmatprep.subr.mxu0 0.0
    %592 = vmatpush1.msra.mxu0 0.0
    %593 = vmatprep.subr.mxu0 0.0
    %594 = vmatpush1.msra.mxu0 0.0
    %595 = vmatprep.subr.mxu0 0.0
    %596 = vmatpush1.msra.mxu0 0.0
    %597 = vmatprep.subr.mxu0 0.0
    %598 = vmatpush1.msra.mxu0 0.0
    %599 = vmatprep.subr.mxu0 0.0
    %600 = vmatpush1.msra.mxu0 0.0
    %601 = vmatprep.subr.mxu0 0.0
    %602 = vmatpush1.msra.mxu0 0.0
    %603 = vmatprep.subr.mxu0 0.0
    %604 = vmatpush1.msra.mxu0 0.0
    %605 = vmatprep.subr.mxu0 0.0
    %606 = vmatpush1.msra.mxu0 0.0
    %607 = vmatprep.subr.mxu0 0.0
    %608 = vmatpush1.msra.mxu0 0.0
    %609 = vmatprep.subr.mxu0 0.0
    %610 = vmatpush1.msra.mxu0 0.0
    %611 = vmatprep.subr.mxu0 0.0
    %612 = vmatpush1.msra.mxu0 0.0
    %613 = vmatprep.subr.mxu0 0.0
    %614 = vmatpush1.msra.mxu0 0.0
    %615 = vmatprep.subr.mxu0 0.0
    %616 = vmatpush1.msra.mxu0 0.0
    %617 = vmatprep.subr.mxu0 0.0
    %618 = vmatpush1.msra.mxu0 0.0
    %619 = vmatprep.subr.mxu0 0.0
    %620 = vmatpush1.msra.mxu0 0.0
    %621 = vmatprep.subr.mxu0 0.0
    %622 = vmatpush1.msra.mxu0 0.0
    %623 = vmatprep.mubr.f32.mxu0 0.0
    %624 = vmatmul.mubr.f32.gmra.mrb[0].mxu0 %v557
    %v625 = vpop.f32.mrb[0].mxu0
    %v626 = vadd.f32 0.0, %v625
    %v627 = vpop.f32.mrb[0].mxu0
    %628 = vdwg.mxu0
    %v629 = vadd.f32 %v303, %v626
    %v630 = vsub.f32 0.0, %v629
    %v631 = vmul.f32 %v630, 1.442695
    %v632 = vpow.pop %v631
    %v633 = vadd.f32 %v632, 1.0
    %v634 = vrcp.pop %v633
    %v635 = vmul.f32 1.0, %v634
    %v636 = vtanh.pop %v629
    %v637 = vmul.f32 %v635, %v547
    %639 = vrot.lane.b32.xlu0 %v636, 64
    %v640 = vpop.permute.xlu0 %639
    %v642 = vmul.f32 %v635, %v640
    %644 = vrot.lane.b32.xlu0 %v642, 32
    %v645 = vpop.permute.xlu0 %644
    %v647 = vadd.f32 %v637, %v645
    %v648 = vtanh.pop %v647
    %650 = vrot.lane.b32.xlu0 %v648, 64
    %v651 = vpop.permute.xlu0 %650
    %v653 = vmul.f32 %v635, %v651
    %655 = vrot.lane.b32.xlu0 %v653, 32
    %v656 = vpop.permute.xlu0 %655
    %v657 = vsel %vm196, %v656, 0
    %659 = vmatprep.subr.mxu0 0.0
    %660 = vmatpush1.msra.mxu0 %v326
    %661 = vmatprep.subr.mxu0 0.0
    %662 = vmatpush1.msra.mxu0 %v327
    %663 = vmatprep.subr.mxu0 0.0
    %664 = vmatpush1.msra.mxu0 %v328
    %665 = vmatprep.subr.mxu0 0.0
    %666 = vmatpush1.msra.mxu0 %v329
    %667 = vmatprep.subr.mxu0 0.0
    %668 = vmatpush1.msra.mxu0 0.0
    %669 = vmatprep.subr.mxu0 0.0
    %670 = vmatpush1.msra.mxu0 0.0
    %671 = vmatprep.subr.mxu0 0.0
    %672 = vmatpush1.msra.mxu0 0.0
    %673 = vmatprep.subr.mxu0 0.0
    %674 = vmatpush1.msra.mxu0 0.0
    %675 = vmatprep.subr.mxu0 0.0
    %676 = vmatpush1.msra.mxu0 0.0
    %677 = vmatprep.subr.mxu0 0.0
    %678 = vmatpush1.msra.mxu0 0.0
    %679 = vmatprep.subr.mxu0 0.0
    %680 = vmatpush1.msra.mxu0 0.0
    %681 = vmatprep.subr.mxu0 0.0
    %682 = vmatpush1.msra.mxu0 0.0
    %683 = vmatprep.subr.mxu0 0.0
    %684 = vmatpush1.msra.mxu0 0.0
    %685 = vmatprep.subr.mxu0 0.0
    %686 = vmatpush1.msra.mxu0 0.0
    %687 = vmatprep.subr.mxu0 0.0
    %688 = vmatpush1.msra.mxu0 0.0
    %689 = vmatprep.subr.mxu0 0.0
    %690 = vmatpush1.msra.mxu0 0.0
    %691 = vmatprep.subr.mxu0 0.0
    %692 = vmatpush1.msra.mxu0 0.0
    %693 = vmatprep.subr.mxu0 0.0
    %694 = vmatpush1.msra.mxu0 0.0
    %695 = vmatprep.subr.mxu0 0.0
    %696 = vmatpush1.msra.mxu0 0.0
    %697 = vmatprep.subr.mxu0 0.0
    %698 = vmatpush1.msra.mxu0 0.0
    %699 = vmatprep.subr.mxu0 0.0
    %700 = vmatpush1.msra.mxu0 0.0
    %701 = vmatprep.subr.mxu0 0.0
    %702 = vmatpush1.msra.mxu0 0.0
    %703 = vmatprep.subr.mxu0 0.0
    %704 = vmatpush1.msra.mxu0 0.0
    %705 = vmatprep.subr.mxu0 0.0
    %706 = vmatpush1.msra.mxu0 0.0
    %707 = vmatprep.subr.mxu0 0.0
    %708 = vmatpush1.msra.mxu0 0.0
    %709 = vmatprep.subr.mxu0 0.0
    %710 = vmatpush1.msra.mxu0 0.0
    %711 = vmatprep.subr.mxu0 0.0
    %712 = vmatpush1.msra.mxu0 0.0
    %713 = vmatprep.subr.mxu0 0.0
    %714 = vmatpush1.msra.mxu0 0.0
    %715 = vmatprep.subr.mxu0 0.0
    %716 = vmatpush1.msra.mxu0 0.0
    %717 = vmatprep.subr.mxu0 0.0
    %718 = vmatpush1.msra.mxu0 0.0
    %719 = vmatprep.subr.mxu0 0.0
    %720 = vmatpush1.msra.mxu0 0.0
    %721 = vmatprep.subr.mxu0 0.0
    %722 = vmatpush1.msra.mxu0 0.0
    %723 = vmatprep.mubr.f32.mxu0 0.0
    %724 = vmatmul.mubr.f32.gmra.mrb[0].mxu0 %v657
    %v725 = vpop.f32.mrb[0].mxu0
    %v726 = vadd.f32 0.0, %v725
    %v727 = vpop.f32.mrb[0].mxu0
    %728 = vdwg.mxu0
    %v729 = vadd.f32 %v308, %v726
    %v730 = vsub.f32 0.0, %v729
    %v731 = vmul.f32 %v730, 1.442695
    %v732 = vpow.pop %v731
    %v733 = vadd.f32 %v732, 1.0
    %v734 = vrcp.pop %v733
    %v735 = vmul.f32 1.0, %v734
    %v736 = vtanh.pop %v729
    %v737 = vmul.f32 %v735, %v647
    %739 = vrot.lane.b32.xlu0 %v736, 64
    %v740 = vpop.permute.xlu0 %739
    %v742 = vmul.f32 %v735, %v740
    %744 = vrot.lane.b32.xlu0 %v742, 32
    %v745 = vpop.permute.xlu0 %744
    %v747 = vadd.f32 %v737, %v745
    %v748 = vtanh.pop %v747
    %750 = vrot.lane.b32.xlu0 %v748, 64
    %v751 = vpop.permute.xlu0 %750
    %v753 = vmul.f32 %v735, %v751
    %755 = vrot.lane.b32.xlu0 %v753, 32
    %v756 = vpop.permute.xlu0 %755
    %v757 = vsel %vm196, %v756, 0
    %759 = vmatprep.subr.mxu0 0.0
    %760 = vmatpush1.msra.mxu0 %v326
    %761 = vmatprep.subr.mxu0 0.0
    %762 = vmatpush1.msra.mxu0 %v327
    %763 = vmatprep.subr.mxu0 0.0
    %764 = vmatpush1.msra.mxu0 %v328
    %765 = vmatprep.subr.mxu0 0.0
    %766 = vmatpush1.msra.mxu0 %v329
    %767 = vmatprep.subr.mxu0 0.0
    %768 = vmatpush1.msra.mxu0 0.0
    %769 = vmatprep.subr.mxu0 0.0
    %770 = vmatpush1.msra.mxu0 0.0
    %771 = vmatprep.subr.mxu0 0.0
    %772 = vmatpush1.msra.mxu0 0.0
    %773 = vmatprep.subr.mxu0 0.0
    %774 = vmatpush1.msra.mxu0 0.0
    %775 = vmatprep.subr.mxu0 0.0
    %776 = vmatpush1.msra.mxu0 0.0
    %777 = vmatprep.subr.mxu0 0.0
    %778 = vmatpush1.msra.mxu0 0.0
    %779 = vmatprep.subr.mxu0 0.0
    %780 = vmatpush1.msra.mxu0 0.0
    %781 = vmatprep.subr.mxu0 0.0
    %782 = vmatpush1.msra.mxu0 0.0
    %783 = vmatprep.subr.mxu0 0.0
    %784 = vmatpush1.msra.mxu0 0.0
    %785 = vmatprep.subr.mxu0 0.0
    %786 = vmatpush1.msra.mxu0 0.0
    %787 = vmatprep.subr.mxu0 0.0
    %788 = vmatpush1.msra.mxu0 0.0
    %789 = vmatprep.subr.mxu0 0.0
    %790 = vmatpush1.msra.mxu0 0.0
    %791 = vmatprep.subr.mxu0 0.0
    %792 = vmatpush1.msra.mxu0 0.0
    %793 = vmatprep.subr.mxu0 0.0
    %794 = vmatpush1.msra.mxu0 0.0
    %795 = vmatprep.subr.mxu0 0.0
    %796 = vmatpush1.msra.mxu0 0.0
    %797 = vmatprep.subr.mxu0 0.0
    %798 = vmatpush1.msra.mxu0 0.0
    %799 = vmatprep.subr.mxu0 0.0
    %800 = vmatpush1.msra.mxu0 0.0
    %801 = vmatprep.subr.mxu0 0.0
    %802 = vmatpush1.msra.mxu0 0.0
    %803 = vmatprep.subr.mxu0 0.0
    %804 = vmatpush1.msra.mxu0 0.0
    %805 = vmatprep.subr.mxu0 0.0
    %806 = vmatpush1.msra.mxu0 0.0
    %807 = vmatprep.subr.mxu0 0.0
    %808 = vmatpush1.msra.mxu0 0.0
    %809 = vmatprep.subr.mxu0 0.0
    %810 = vmatpush1.msra.mxu0 0.0
    %811 = vmatprep.subr.mxu0 0.0
    %812 = vmatpush1.msra.mxu0 0.0
    %813 = vmatprep.subr.mxu0 0.0
    %814 = vmatpush1.msra.mxu0 0.0
    %815 = vmatprep.subr.mxu0 0.0
    %816 = vmatpush1.msra.mxu0 0.0
    %817 = vmatprep.subr.mxu0 0.0
    %818 = vmatpush1.msra.mxu0 0.0
    %819 = vmatprep.subr.mxu0 0.0
    %820 = vmatpush1.msra.mxu0 0.0
    %821 = vmatprep.subr.mxu0 0.0
    %822 = vmatpush1.msra.mxu0 0.0
    %823 = vmatprep.mubr.f32.mxu0 0.0
    %824 = vmatmul.mubr.f32.gmra.mrb[0].mxu0 %v757
    %v825 = vpop.f32.mrb[0].mxu0
    %v826 = vadd.f32 0.0, %v825
    %v827 = vpop.f32.mrb[0].mxu0
    %828 = vdwg.mxu0
    %v829 = vadd.f32 %v313, %v826
    %v830 = vsub.f32 0.0, %v829
    %v831 = vmul.f32 %v830, 1.442695
    %v832 = vpow.pop %v831
    %v833 = vadd.f32 %v832, 1.0
    %v834 = vrcp.pop %v833
    %v835 = vmul.f32 1.0, %v834
    %v836 = vtanh.pop %v829
    %v837 = vmul.f32 %v835, %v747
    %839 = vrot.lane.b32.xlu0 %v836, 64
    %v840 = vpop.permute.xlu0 %839
    %v842 = vmul.f32 %v835, %v840
    %844 = vrot.lane.b32.xlu0 %v842, 32
    %v845 = vpop.permute.xlu0 %844
    %v847 = vadd.f32 %v837, %v845
    %v848 = vtanh.pop %v847
    %850 = vrot.lane.b32.xlu0 %v848, 64
    %v851 = vpop.permute.xlu0 %850
    %v853 = vmul.f32 %v835, %v851
    %855 = vrot.lane.b32.xlu0 %v853, 32
    %v856 = vpop.permute.xlu0 %855
    %v857 = vsel %vm196, %v856, 0
    %859 = vmatprep.subr.mxu0 0.0
    %860 = vmatpush1.msra.mxu0 %v326
    %861 = vmatprep.subr.mxu0 0.0
    %862 = vmatpush1.msra.mxu0 %v327
    %863 = vmatprep.subr.mxu0 0.0
    %864 = vmatpush1.msra.mxu0 %v328
    %865 = vmatprep.subr.mxu0 0.0
    %866 = vmatpush1.msra.mxu0 %v329
    %867 = vmatprep.subr.mxu0 0.0
    %868 = vmatpush1.msra.mxu0 0.0
    %869 = vmatprep.subr.mxu0 0.0
    %870 = vmatpush1.msra.mxu0 0.0
    %871 = vmatprep.subr.mxu0 0.0
    %872 = vmatpush1.msra.mxu0 0.0
    %873 = vmatprep.subr.mxu0 0.0
    %874 = vmatpush1.msra.mxu0 0.0
    %875 = vmatprep.subr.mxu0 0.0
    %876 = vmatpush1.msra.mxu0 0.0
    %877 = vmatprep.subr.mxu0 0.0
    %878 = vmatpush1.msra.mxu0 0.0
    %879 = vmatprep.subr.mxu0 0.0
    %880 = vmatpush1.msra.mxu0 0.0
    %881 = vmatprep.subr.mxu0 0.0
    %882 = vmatpush1.msra.mxu0 0.0
    %883 = vmatprep.subr.mxu0 0.0
    %884 = vmatpush1.msra.mxu0 0.0
    %885 = vmatprep.subr.mxu0 0.0
    %886 = vmatpush1.msra.mxu0 0.0
    %887 = vmatprep.subr.mxu0 0.0
    %888 = vmatpush1.msra.mxu0 0.0
    %889 = vmatprep.subr.mxu0 0.0
    %890 = vmatpush1.msra.mxu0 0.0
    %891 = vmatprep.subr.mxu0 0.0
    %892 = vmatpush1.msra.mxu0 0.0
    %893 = vmatprep.subr.mxu0 0.0
    %894 = vmatpush1.msra.mxu0 0.0
    %895 = vmatprep.subr.mxu0 0.0
    %896 = vmatpush1.msra.mxu0 0.0
    %897 = vmatprep.subr.mxu0 0.0
    %898 = vmatpush1.msra.mxu0 0.0
    %899 = vmatprep.subr.mxu0 0.0
    %900 = vmatpush1.msra.mxu0 0.0
    %901 = vmatprep.subr.mxu0 0.0
    %902 = vmatpush1.msra.mxu0 0.0
    %903 = vmatprep.subr.mxu0 0.0
    %904 = vmatpush1.msra.mxu0 0.0
    %905 = vmatprep.subr.mxu0 0.0
    %906 = vmatpush1.msra.mxu0 0.0
    %907 = vmatprep.subr.mxu0 0.0
    %908 = vmatpush1.msra.mxu0 0.0
    %909 = vmatprep.subr.mxu0 0.0
    %910 = vmatpush1.msra.mxu0 0.0
    %911 = vmatprep.subr.mxu0 0.0
    %912 = vmatpush1.msra.mxu0 0.0
    %913 = vmatprep.subr.mxu0 0.0
    %914 = vmatpush1.msra.mxu0 0.0
    %915 = vmatprep.subr.mxu0 0.0
    %916 = vmatpush1.msra.mxu0 0.0
    %917 = vmatprep.subr.mxu0 0.0
    %918 = vmatpush1.msra.mxu0 0.0
    %919 = vmatprep.subr.mxu0 0.0
    %920 = vmatpush1.msra.mxu0 0.0
    %921 = vmatprep.subr.mxu0 0.0
    %922 = vmatpush1.msra.mxu0 0.0
    %923 = vmatprep.mubr.f32.mxu0 0.0
    %924 = vmatmul.mubr.f32.gmra.mrb[0].mxu0 %v857
    %v925 = vpop.f32.mrb[0].mxu0
    %v926 = vadd.f32 0.0, %v925
    %v927 = vpop.f32.mrb[0].mxu0
    %928 = vdwg.mxu0
    %v929 = vadd.f32 %v318, %v926
    %v930 = vsub.f32 0.0, %v929
    %v931 = vmul.f32 %v930, 1.442695
    %v932 = vpow.pop %v931
    %v933 = vadd.f32 %v932, 1.0
    %v934 = vrcp.pop %v933
    %v935 = vmul.f32 1.0, %v934
    %v936 = vtanh.pop %v929
    %v937 = vmul.f32 %v935, %v847
    %939 = vrot.lane.b32.xlu0 %v936, 64
    %v940 = vpop.permute.xlu0 %939
    %v942 = vmul.f32 %v935, %v940
    %944 = vrot.lane.b32.xlu0 %v942, 32
    %v945 = vpop.permute.xlu0 %944
    %v947 = vadd.f32 %v937, %v945
    %v948 = vtanh.pop %v947
    %950 = vrot.lane.b32.xlu0 %v948, 64
    %v951 = vpop.permute.xlu0 %950
    %v953 = vmul.f32 %v935, %v951
    %955 = vrot.lane.b32.xlu0 %v953, 32
    %v956 = vpop.permute.xlu0 %955
    %v957 = vsel %vm196, %v956, 0
    %959 = vmatprep.subr.mxu0 0.0
    %960 = vmatpush1.msra.mxu0 %v326
    %961 = vmatprep.subr.mxu0 0.0
    %962 = vmatpush1.msra.mxu0 %v327
    %963 = vmatprep.subr.mxu0 0.0
    %964 = vmatpush1.msra.mxu0 %v328
    %965 = vmatprep.subr.mxu0 0.0
    %966 = vmatpush1.msra.mxu0 %v329
    %967 = vmatprep.subr.mxu0 0.0
    %968 = vmatpush1.msra.mxu0 0.0
    %969 = vmatprep.subr.mxu0 0.0
    %970 = vmatpush1.msra.mxu0 0.0
    %971 = vmatprep.subr.mxu0 0.0
    %972 = vmatpush1.msra.mxu0 0.0
    %973 = vmatprep.subr.mxu0 0.0
    %974 = vmatpush1.msra.mxu0 0.0
    %975 = vmatprep.subr.mxu0 0.0
    %976 = vmatpush1.msra.mxu0 0.0
    %977 = vmatprep.subr.mxu0 0.0
    %978 = vmatpush1.msra.mxu0 0.0
    %979 = vmatprep.subr.mxu0 0.0
    %980 = vmatpush1.msra.mxu0 0.0
    %981 = vmatprep.subr.mxu0 0.0
    %982 = vmatpush1.msra.mxu0 0.0
    %983 = vmatprep.subr.mxu0 0.0
    %984 = vmatpush1.msra.mxu0 0.0
    %985 = vmatprep.subr.mxu0 0.0
    %986 = vmatpush1.msra.mxu0 0.0
    %987 = vmatprep.subr.mxu0 0.0
    %988 = vmatpush1.msra.mxu0 0.0
    %989 = vmatprep.subr.mxu0 0.0
    %990 = vmatpush1.msra.mxu0 0.0
    %991 = vmatprep.subr.mxu0 0.0
    %992 = vmatpush1.msra.mxu0 0.0
    %993 = vmatprep.subr.mxu0 0.0
    %994 = vmatpush1.msra.mxu0 0.0
    %995 = vmatprep.subr.mxu0 0.0
    %996 = vmatpush1.msra.mxu0 0.0
    %997 = vmatprep.subr.mxu0 0.0
    %998 = vmatpush1.msra.mxu0 0.0
    %999 = vmatprep.subr.mxu0 0.0
    %1000 = vmatpush1.msra.mxu0 0.0
    %1001 = vmatprep.subr.mxu0 0.0
    %1002 = vmatpush1.msra.mxu0 0.0
    %1003 = vmatprep.subr.mxu0 0.0
    %1004 = vmatpush1.msra.mxu0 0.0
    %1005 = vmatprep.subr.mxu0 0.0
    %1006 = vmatpush1.msra.mxu0 0.0
    %1007 = vmatprep.subr.mxu0 0.0
    %1008 = vmatpush1.msra.mxu0 0.0
    %1009 = vmatprep.subr.mxu0 0.0
    %1010 = vmatpush1.msra.mxu0 0.0
    %1011 = vmatprep.subr.mxu0 0.0
    %1012 = vmatpush1.msra.mxu0 0.0
    %1013 = vmatprep.subr.mxu0 0.0
    %1014 = vmatpush1.msra.mxu0 0.0
    %1015 = vmatprep.subr.mxu0 0.0
    %1016 = vmatpush1.msra.mxu0 0.0
    %1017 = vmatprep.subr.mxu0 0.0
    %1018 = vmatpush1.msra.mxu0 0.0
    %1019 = vmatprep.subr.mxu0 0.0
    %1020 = vmatpush1.msra.mxu0 0.0
    %1021 = vmatprep.subr.mxu0 0.0
    %1022 = vmatpush1.msra.mxu0 0.0
    %1023 = vmatprep.mubr.f32.mxu0 0.0
    %1024 = vmatmul.mubr.f32.gmra.mrb[0].mxu0 %v957
    %v1025 = vpop.f32.mrb[0].mxu0
    %v1026 = vadd.f32 0.0, %v1025
    %v1027 = vpop.f32.mrb[0].mxu0
    %1028 = vdwg.mxu0
    %v1029 = vadd.f32 %v323, %v1026
    %v1030 = vsub.f32 0.0, %v1029
    %v1031 = vmul.f32 %v1030, 1.442695
    %v1032 = vpow.pop %v1031
    %v1033 = vadd.f32 %v1032, 1.0
    %v1034 = vrcp.pop %v1033
    %v1035 = vmul.f32 1.0, %v1034
    %v1036 = vtanh.pop %v1029
    %v1037 = vmul.f32 %v1035, %v947
    %1039 = vrot.lane.b32.xlu0 %v1036, 64
    %v1040 = vpop.permute.xlu0 %1039
    %v1042 = vmul.f32 %v1035, %v1040
    %1044 = vrot.lane.b32.xlu0 %v1042, 32
    %v1045 = vpop.permute.xlu0 %1044
    %v1047 = vadd.f32 %v1037, %v1045
    %v1048 = vtanh.pop %v1047
    %1050 = vrot.lane.b32.xlu0 %v1048, 64
    %v1051 = vpop.permute.xlu0 %1050
    %v1053 = vmul.f32 %v1035, %v1051
    %v1054 = vmul.f32 %v353, %v1053
    %1056 = vrot.lane.b32.xlu0 %v1054, 32
    %v1057 = vpop.permute.xlu0 %1056
    %v1059 = vsel %vm196, %v1057, 0.0
    %1060 = vadd.xlane.f32.xlu0 %v1059
    %v1061 = vpop.xlane.xlu0 %1060
    %v1062 = vmul.f32 %v453, %v1053
    %1064 = vrot.lane.b32.xlu0 %v1062, 32
    %v1065 = vpop.permute.xlu0 %1064
    %v1067 = vsel %vm196, %v1065, 0.0
    %1068 = vadd.xlane.f32.xlu0 %v1067
    %v1069 = vpop.xlane.xlu0 %1068
    %v1070 = vmul.f32 %v553, %v1053
    %1072 = vrot.lane.b32.xlu0 %v1070, 32
    %v1073 = vpop.permute.xlu0 %1072
    %v1075 = vsel %vm196, %v1073, 0.0
    %1076 = vadd.xlane.f32.xlu0 %v1075
    %v1077 = vpop.xlane.xlu0 %1076
    %v1078 = vmul.f32 %v653, %v1053
    %1080 = vrot.lane.b32.xlu0 %v1078, 32
    %v1081 = vpop.permute.xlu0 %1080
    %v1083 = vsel %vm196, %v1081, 0.0
    %1084 = vadd.xlane.f32.xlu0 %v1083
    %v1085 = vpop.xlane.xlu0 %1084
    %v1086 = vmul.f32 %v753, %v1053
    %1088 = vrot.lane.b32.xlu0 %v1086, 32
    %v1089 = vpop.permute.xlu0 %1088
    %v1091 = vsel %vm196, %v1089, 0.0
    %1092 = vadd.xlane.f32.xlu0 %v1091
    %v1093 = vpop.xlane.xlu0 %1092
    %v1094 = vmul.f32 %v853, %v1053
    %1096 = vrot.lane.b32.xlu0 %v1094, 32
    %v1097 = vpop.permute.xlu0 %1096
    %v1099 = vsel %vm196, %v1097, 0.0
    %1100 = vadd.xlane.f32.xlu0 %v1099
    %v1101 = vpop.xlane.xlu0 %1100
    %v1102 = vmul.f32 %v953, %v1053
    %1104 = vrot.lane.b32.xlu0 %v1102, 32
    %v1105 = vpop.permute.xlu0 %1104
    %v1107 = vsel %vm196, %v1105, 0.0
    %1108 = vadd.xlane.f32.xlu0 %v1107
    %v1109 = vpop.xlane.xlu0 %1108
    %v1110 = vmul.f32 %v1053, %v1053
    %1112 = vrot.lane.b32.xlu0 %v1110, 32
    %v1113 = vpop.permute.xlu0 %1112
    %v1115 = vsel %vm196, %v1113, 0.0
    %1116 = vadd.xlane.f32.xlu0 %v1115
    %v1117 = vpop.xlane.xlu0 %1116
    %v1118 = vmax.f32 %v1061, %v1069
    %v1119 = vmax.f32 %v1118, %v1077
    %v1120 = vmax.f32 %v1119, %v1085
    %v1121 = vmax.f32 %v1120, %v1093
    %v1122 = vmax.f32 %v1121, %v1101
    %v1123 = vmax.f32 %v1122, %v1109
    %v1124 = vmax.f32 %v1123, %v1117
    %v1125 = vsub.f32 %v1061, %v1124
    %v1126 = vmul.f32 %v1125, 1.442695
    %v1127 = vpow.pop %v1126
    %v1128 = vsub.f32 %v1069, %v1124
    %v1129 = vmul.f32 %v1128, 1.442695
    %v1130 = vpow.pop %v1129
    %v1131 = vsub.f32 %v1077, %v1124
    %v1132 = vmul.f32 %v1131, 1.442695
    %v1133 = vpow.pop %v1132
    %v1134 = vsub.f32 %v1085, %v1124
    %v1135 = vmul.f32 %v1134, 1.442695
    %v1136 = vpow.pop %v1135
    %v1137 = vsub.f32 %v1093, %v1124
    %v1138 = vmul.f32 %v1137, 1.442695
    %v1139 = vpow.pop %v1138
    %v1140 = vsub.f32 %v1101, %v1124
    %v1141 = vmul.f32 %v1140, 1.442695
    %v1142 = vpow.pop %v1141
    %v1143 = vsub.f32 %v1109, %v1124
    %v1144 = vmul.f32 %v1143, 1.442695
    %v1145 = vpow.pop %v1144
    %v1146 = vsub.f32 %v1117, %v1124
    %v1147 = vmul.f32 %v1146, 1.442695
    %v1148 = vpow.pop %v1147
    %v1149 = vadd.f32 %v1127, %v1130
    %v1150 = vadd.f32 %v1149, %v1133
    %v1151 = vadd.f32 %v1150, %v1136
    %v1152 = vadd.f32 %v1151, %v1139
    %v1153 = vadd.f32 %v1152, %v1142
    %v1154 = vadd.f32 %v1153, %v1145
    %v1155 = vadd.f32 %v1154, %v1148
    %v1156 = vrcp.pop %v1155
    %v1157 = vmul.f32 %v1127, %v1156
    %v1158 = vmul.f32 %v1157, %v353
    %v1159 = vmul.f32 %v1130, %v1156
    %v1160 = vmul.f32 %v1159, %v453
    %v1161 = vadd.f32 %v1158, %v1160
    %v1162 = vmul.f32 %v1133, %v1156
    %v1163 = vmul.f32 %v1162, %v553
    %v1164 = vadd.f32 %v1161, %v1163
    %v1165 = vmul.f32 %v1136, %v1156
    %v1166 = vmul.f32 %v1165, %v653
    %v1167 = vadd.f32 %v1164, %v1166
    %v1168 = vmul.f32 %v1139, %v1156
    %v1169 = vmul.f32 %v1168, %v753
    %v1170 = vadd.f32 %v1167, %v1169
    %v1171 = vmul.f32 %v1142, %v1156
    %v1172 = vmul.f32 %v1171, %v853
    %v1173 = vadd.f32 %v1170, %v1172
    %v1174 = vmul.f32 %v1145, %v1156
    %v1175 = vmul.f32 %v1174, %v953
    %v1176 = vadd.f32 %v1173, %v1175
    %v1177 = vmul.f32 %v1148, %v1156
    %v1178 = vmul.f32 %v1177, %v1053
    %v1179 = vadd.f32 %v1176, %v1178
    %v1180 = vlaneseq
    %v1181 = vshrl.u32 %v1180, 7
    %vm1182 = vcmp.ge.s32.totalorder %v1181, 0
    %vm1183 = vcmp.lt.s32.totalorder %v1181, 4
    %vm1184 = vmand %vm1182, %vm1183
    %v1185 = vsel %vm1184, 1, 0
    %v1186 = vcvt.s32.f32 %v1185
    %v1187 = vmul.f32 %v1179, %v1186
    %1189 = vrot.lane.b32.xlu0 %v1187, 32
    %v1190 = vpop.permute.xlu0 %1189
    %v1192 = vsel %vm196, %v1190, 0.0
    %1193 = vadd.xlane.f32.xlu0 %v1192
    %v1194 = vpop.xlane.xlu0 %1193
    %v1195 = vrot.slane %v1194, 4
    %v1196 = vadd.f32 %v1194, %v1195
    %v1197 = vrot.slane %v1196, 2
    %v1198 = vadd.f32 %v1196, %v1197
    %v1199 = vrot.slane %v1198, 1
    %v1200 = vadd.f32 %v1198, %v1199
    %v1201 = vrcp.pop 128.0
    %v1202 = vmul.f32 %v1200, %v1201
    %v1203 = vsub.f32 %v1179, %v1202
    %v1204 = vmul.f32 %v1203, %v1203
    %v1205 = vmul.f32 %v1204, %v1186
    %1207 = vrot.lane.b32.xlu0 %v1205, 32
    %v1208 = vpop.permute.xlu0 %1207
    %v1210 = vsel %vm196, %v1208, 0.0
    %1211 = vadd.xlane.f32.xlu0 %v1210
    %v1212 = vpop.xlane.xlu0 %1211
    %v1213 = vrot.slane %v1212, 4
    %v1214 = vadd.f32 %v1212, %v1213
    %v1215 = vrot.slane %v1214, 2
    %v1216 = vadd.f32 %v1214, %v1215
    %v1217 = vrot.slane %v1216, 1
    %v1218 = vadd.f32 %v1216, %v1217
    %v1219 = vrcp.pop 127.0
    %v1220 = vmul.f32 %v1218, %v1219
    %v1221 = vrsqrt.pop %v1220
    %v1222 = vmul.f32 %v1220, %v1221
    %vm1223 = vcmp.eq.f32.partialorder %v1220, inf
    %v1224 = vsel %vm1223, %v1220, %v1222
    %vm1225 = vcmp.eq.f32.partialorder %v1220, 0.0
    %v1226 = vand.u32 %v1220, 2147483648
    %v1227 = vsel %vm1225, %v1226, %v1224
    %v1228 = vadd.f32 %v1227, 1e-09
    %v1229 = vrcp.pop %v1228
    %v1230 = vmul.f32 %v1186, %v1202
    %v1231 = vadd.f32 %v1230, 0.0
    %v1232 = vmul.f32 %v1186, %v1229
    %v1233 = vadd.f32 %v1232, 0.0
    %vm1234 = vcmp.ge.s32.totalorder %v1181, 4
    %vm1235 = vcmp.lt.s32.totalorder %v1181, 8
    %vm1236 = vmand %vm1234, %vm1235
    %v1237 = vsel %vm1236, 1, 0
    %v1238 = vcvt.s32.f32 %v1237
    %v1239 = vmul.f32 %v1179, %v1238
    %1241 = vrot.lane.b32.xlu0 %v1239, 32
    %v1242 = vpop.permute.xlu0 %1241
    %v1244 = vsel %vm196, %v1242, 0.0
    %1245 = vadd.xlane.f32.xlu0 %v1244
    %v1246 = vpop.xlane.xlu0 %1245
    %v1247 = vrot.slane %v1246, 4
    %v1248 = vadd.f32 %v1246, %v1247
    %v1249 = vrot.slane %v1248, 2
    %v1250 = vadd.f32 %v1248, %v1249
    %v1251 = vrot.slane %v1250, 1
    %v1252 = vadd.f32 %v1250, %v1251
    %v1253 = vmul.f32 %v1252, %v1201
    %v1254 = vsub.f32 %v1179, %v1253
    %v1255 = vmul.f32 %v1254, %v1254
    %v1256 = vmul.f32 %v1255, %v1238
    %1258 = vrot.lane.b32.xlu0 %v1256, 32
    %v1259 = vpop.permute.xlu0 %1258
    %v1261 = vsel %vm196, %v1259, 0.0
    %1262 = vadd.xlane.f32.xlu0 %v1261
    %v1263 = vpop.xlane.xlu0 %1262
    %v1264 = vrot.slane %v1263, 4
    %v1265 = vadd.f32 %v1263, %v1264
    %v1266 = vrot.slane %v1265, 2
    %v1267 = vadd.f32 %v1265, %v1266
    %v1268 = vrot.slane %v1267, 1
    %v1269 = vadd.f32 %v1267, %v1268
    %v1270 = vmul.f32 %v1269, %v1219
    %v1271 = vrsqrt.pop %v1270
    %v1272 = vmul.f32 %v1270, %v1271
    %vm1273 = vcmp.eq.f32.partialorder %v1270, inf
    %v1274 = vsel %vm1273, %v1270, %v1272
    %vm1275 = vcmp.eq.f32.partialorder %v1270, 0.0
    %v1276 = vand.u32 %v1270, 2147483648
    %v1277 = vsel %vm1275, %v1276, %v1274
    %v1278 = vadd.f32 %v1277, 1e-09
    %v1279 = vrcp.pop %v1278
    %v1280 = vmul.f32 %v1238, %v1253
    %v1281 = vadd.f32 %v1231, %v1280
    %v1282 = vmul.f32 %v1238, %v1279
    %v1283 = vadd.f32 %v1233, %v1282
    %v1284 = vsub.f32 %v1179, %v1281
    %v1285 = vmul.f32 %v1284, %v1283
    %v1286 = vld [vmem:[%s6] sm:$0xff]
    %1288 = vrot.lane.b32.xlu0 %v1285, 32
    %v1289 = vpop.permute.xlu0 %1288
    %v1291 = vmul.f32 %v1286, %v1289
    %v1292 = vld [vmem:[%s7] sm:$0xff]
    %v1293 = vadd.f32 %v1291, %v1292
    %1294 = vst.msk [vmem:[#allocation2] sm:$0xff] %vm196, %v1293
    // Predicated region
    $region34: #{tpu_custom_call.1} parent=1 // pred_check
      _
    $region35: #{tpu_custom_call.1} parent=1 // pred_check_branch
      %1296 = sbr.rel (0) target = $region37
    $region36: #{tpu_custom_call.1} parent=1 // pred_region
      %s1298 = ssub.s32 128, 128
      %1299 = vsyncadd [#allocation3], %s1298
      %s1301 = sshll.u32 [#allocation2], 4
      %s1302 = int_to_ptr.vmem [resolvable:$true] %s1301
      %1304 = dma.vmem_to_hbm [thread:$0]  %s1302, 128, %s8, [#allocation3]
    $region37: #{tpu_custom_call.1} parent=1 // pred_fallthru
      _
    // Predicated region
    $region38: #{tpu_custom_call.1} parent=1 // pred_check
      _
    $region39: #{tpu_custom_call.1} parent=1 // pred_check_branch
      %1306 = sbr.rel (0) target = $region41
    $region40: #{tpu_custom_call.1} parent=1 // pred_region
      %1307 = dma.done [#allocation3], 128
    $region41: #{tpu_custom_call.1} parent=1 // pred_fallthru
      _
    %1308 = vsyncpa [#allocation3], 1

</llo_original>
